<compile_context>
chip_gen: v7x
topology: tpu7x:2x2x1
jax: 0.10.0
libtpu: 0.0.40
codegen_flags: <defaults>
</compile_context>

<pallas_src>
import jax
import jax.numpy as jnp
from jax import lax
from jax.experimental import pallas as pl
from jax.experimental.pallas import tpu as pltpu


def decodeur_kernel(tokens_ref, emb_ref, w_x_ref, b_x_ref,
                    w_zr_h_ref, wh_h_ref, wo_ref, bo_ref,
                    out_idx_ref):
    """Fused embedding-gather + GRU recurrence + decode + argmax.

    tokens_ref : (L, 1)  i32  VMEM  (decoder input token ids)
    emb_ref    : (V, E)  f32  VMEM  (embedding table)
    w_x_ref    : (E, 3H) f32  VMEM  ([Wz_x | Wr_x | Wh_x], pre-transposed)
    b_x_ref    : (1, 3H) f32  VMEM  ([bz | br | bh])
    w_zr_h_ref : (H, 2H) f32  VMEM  ([Wz_h | Wr_h], pre-transposed)
    wh_h_ref   : (H, H)  f32  VMEM
    wo_ref     : (H, Op) f32  VMEM  (decode weight, columns zero-padded to 128)
    bo_ref     : (1, Op) f32  VMEM  (decode bias, padded lanes at -1e30)
    out_idx_ref: (1,)    i32  SMEM  (argmax over output_dim)
    """
    L = tokens_ref.shape[0]
    V, _ = emb_ref.shape
    H = wh_h_ref.shape[0]

    # ---- Embedding gather as a one-hot matmul: no dynamic VMEM indexing,
    # and out-of-range tokens just produce a zero embedding row (OOB-safe).
    tok = tokens_ref[...]                                       # (L, 1) i32
    col = lax.broadcasted_iota(jnp.int32, (L, V), 1)            # (L, V)
    one_hot = (col == tok).astype(jnp.float32)                  # (L, V)
    embeds = jnp.dot(one_hot, emb_ref[...],
                     preferred_element_type=jnp.float32)        # (L, E)

    # ---- Hoisted input-side projections for all three gates and all
    # timesteps in a single batched matmul; gate biases folded in here once.
    x_proj = jnp.dot(embeds, w_x_ref[...],
                     preferred_element_type=jnp.float32) + b_x_ref[...]   # (L, 3H)
    x_zr = x_proj[:, :2 * H]                                    # (L, 2H)
    x_h = x_proj[:, 2 * H:]                                     # (L, H)

    w_zr_h = w_zr_h_ref[...]                                    # (H, 2H)
    wh_h = wh_h_ref[...]                                        # (H, H)

    # ---- GRU recurrence: h stays resident in vregs; L is a compile-time
    # constant so the loop is fully unrolled (LLO can interleave steps).
    h = jnp.zeros((1, H), jnp.float32)
    for t in range(L):
        zr = jax.nn.sigmoid(
            jnp.dot(h, w_zr_h, preferred_element_type=jnp.float32)
            + x_zr[t:t + 1, :])                                 # (1, 2H)
        zt = zr[:, :H]
        rt = zr[:, H:]
        h_tilde = jnp.tanh(
            jnp.dot(rt * h, wh_h, preferred_element_type=jnp.float32)
            + x_h[t:t + 1, :])                                  # (1, H)
        h = (1.0 - zt) * h + zt * h_tilde

    # ---- decode(gru_out[-1]) -> argmax.
    # softmax dropped: argmax(softmax(x)) == argmax(x).  Padded logits lanes
    # hold -1e30 so they can never win the argmax.
    logits = jnp.dot(h, wo_ref[...],
                     preferred_element_type=jnp.float32) + bo_ref[...]    # (1, Op)
    out_idx_ref[0] = jnp.argmax(logits, axis=1)[0].astype(jnp.int32)


def decodeur_forward(tokens, packed):
    """Mirrors Decodeur.forward: tokens (L,) int32 -> argmax index, shape (1,)."""
    L = tokens.shape[0]
    vmem = pl.BlockSpec(memory_space=pltpu.MemorySpace.VMEM)

    return pl.pallas_call(
        decodeur_kernel,
        out_shape=jax.ShapeDtypeStruct((1,), jnp.int32),
        in_specs=[vmem] * 8,
        out_specs=pl.BlockSpec(memory_space=pltpu.MemorySpace.SMEM),
    )(
        tokens.astype(jnp.int32).reshape(L, 1),
        packed["embedding"], packed["w_x"], packed["b_x"],
        packed["w_zr_h"], packed["wh_h"],
        packed["wo_pad"], packed["bo_pad"],
    )


def make_params(key, vocab_size, embed_dim, latent_dim, output_dim):
    """Deterministic synthetic parameters matching Decodeur.__init__ shapes.

    PyTorch Linear(in=E+H, out=H) has weight (H, E+H); concat order in the
    reference is cat((h, x), dim=1), so columns [:H] act on h and [H:] on x.
    We store each split transposed to (in, out) for h @ W form.
    """
    ks = jax.random.split(key, 9)
    s = 0.1
    E, H, O, V = embed_dim, latent_dim, output_dim, vocab_size
    return {
        "embedding": jax.random.normal(ks[0], (V, E), jnp.float32) * s,
        "wz_h": jax.random.normal(ks[1], (H, H), jnp.float32) * s,
        "wz_x": jax.random.normal(ks[2], (E, H), jnp.float32) * s,
        "bz": jnp.zeros((1, H), jnp.float32),
        "wr_h": jax.random.normal(ks[3], (H, H), jnp.float32) * s,
        "wr_x": jax.random.normal(ks[4], (E, H), jnp.float32) * s,
        "br": jnp.zeros((1, H), jnp.float32),
        "wh_h": jax.random.normal(ks[5], (H, H), jnp.float32) * s,
        "wh_x": jax.random.normal(ks[6], (E, H), jnp.float32) * s,
        "bh": jnp.zeros((1, H), jnp.float32),
        "wo": jax.random.normal(ks[7], (H, O), jnp.float32) * s,
        "bo": jax.random.normal(ks[8], (1, O), jnp.float32) * s,
    }


def pack_params(params, lane_pad=128):
    """Host-side packing: concat gate weights, pad output dim to 128 lanes."""
    H = params["wz_h"].shape[0]
    O = params["wo"].shape[1]
    Op = ((O + lane_pad - 1) // lane_pad) * lane_pad
    wo_pad = jnp.zeros((H, Op), jnp.float32).at[:, :O].set(params["wo"])
    bo_pad = jnp.full((1, Op), -1e30, jnp.float32).at[:, :O].set(params["bo"])
    return {
        "embedding": params["embedding"],
        "w_x": jnp.concatenate(
            [params["wz_x"], params["wr_x"], params["wh_x"]], axis=1),   # (E, 3H)
        "b_x": jnp.concatenate(
            [params["bz"], params["br"], params["bh"]], axis=1),         # (1, 3H)
        "w_zr_h": jnp.concatenate(
            [params["wz_h"], params["wr_h"]], axis=1),                   # (H, 2H)
        "wh_h": params["wh_h"],                                          # (H, H)
        "wo_pad": wo_pad,                                                # (H, Op)
        "bo_pad": bo_pad,                                                # (1, Op)
    }


def decodeur_forward_ref(tokens, params):
    """Pure-JAX reference of the same forward pass (for verification)."""
    embeds = params["embedding"][tokens]
    h = jnp.zeros((1, params["wz_h"].shape[0]), jnp.float32)

    def step(h, x_t):
        x_t = x_t[None, :]
        zt = jax.nn.sigmoid(h @ params["wz_h"] + x_t @ params["wz_x"] + params["bz"])
        rt = jax.nn.sigmoid(h @ params["wr_h"] + x_t @ params["wr_x"] + params["br"])
        h_tilde = jnp.tanh((rt * h) @ params["wh_h"] + x_t @ params["wh_x"] + params["bh"])
        h_new = (1.0 - zt) * h + zt * h_tilde
        return h_new, None

    h_last, _ = lax.scan(step, h, embeds)
    logits = h_last @ params["wo"] + params["bo"]
    return jnp.argmax(jax.nn.softmax(logits, axis=1), axis=1).astype(jnp.int32)


if __name__ == "__main__":
    # Small shapes consistent with the module: seq=8, vocab=20, embed=32,
    # latent=32, output=20 (output dim == vocab size for translation).
    L, V, E, H, O = 8, 20, 32, 32, 20

    key = jax.random.PRNGKey(0)
    kp, kx = jax.random.split(key)
    params = make_params(kp, vocab_size=V, embed_dim=E, latent_dim=H, output_dim=O)
    packed = pack_params(params)
    tokens = jax.random.randint(kx, (L,), 0, V, dtype=jnp.int32)

    out = decodeur_forward(tokens, packed)
    out = jax.block_until_ready(out)

    ref = jax.block_until_ready(decodeur_forward_ref(tokens, params))
    assert out.shape == (1,) and out.dtype == jnp.int32
    assert int(out[0]) == int(ref[0]), (out, ref)

    print("KERNEL_OK")
</pallas_src>

<mosaic_0001>
module attributes {stable_mosaic.version = 11 : i64} {
  func.func @decodeur_kernel(%arg0: memref<8x1xi32, #tpu.memory_space<vmem>>, %arg1: memref<20x32xf32, #tpu.memory_space<vmem>>, %arg2: memref<32x96xf32, #tpu.memory_space<vmem>>, %arg3: memref<1x96xf32, #tpu.memory_space<vmem>>, %arg4: memref<32x64xf32, #tpu.memory_space<vmem>>, %arg5: memref<32x32xf32, #tpu.memory_space<vmem>>, %arg6: memref<32x128xf32, #tpu.memory_space<vmem>>, %arg7: memref<1x128xf32, #tpu.memory_space<vmem>>, %arg8: memref<1xi32, #tpu.memory_space<smem>>) attributes {dimension_semantics = [], scalar_prefetch = 0 : i64, scratch_operands = 0 : i64, tpu.core_type = #tpu.core_type<tc>} {
    %c0 = arith.constant 0 : index
    %c0_0 = arith.constant 0 : index
    %0 = vector.load %arg0[%c0, %c0_0] : memref<8x1xi32, #tpu.memory_space<vmem>>, vector<8x1xi32>
    %1 = tpu.iota {dimensions = array<i32: 1>} : vector<8x20xi32>
    %2 = vector.broadcast %0 : vector<8x1xi32> to vector<8x20xi32>
    %3 = arith.cmpi eq, %1, %2 : vector<8x20xi32>
    %4 = arith.extui %3 : vector<8x20xi1> to vector<8x20xi32>
    %5 = arith.sitofp %4 : vector<8x20xi32> to vector<8x20xf32>
    %c0_1 = arith.constant 0 : index
    %c0_2 = arith.constant 0 : index
    %6 = vector.load %arg1[%c0_1, %c0_2] : memref<20x32xf32, #tpu.memory_space<vmem>>, vector<20x32xf32>
    %cst = arith.constant dense<0.000000e+00> : vector<8x32xf32>
    %7 = tpu.matmul %5, %6, %cst {dimension_numbers = #tpu.dot_dimension_numbers<[1], [0], [0], [1], [0, 0, 1, 1], [], []>} : vector<8x20xf32>, vector<20x32xf32>, vector<8x32xf32> -> vector<8x32xf32>
    %c0_3 = arith.constant 0 : index
    %c0_4 = arith.constant 0 : index
    %8 = vector.load %arg2[%c0_3, %c0_4] : memref<32x96xf32, #tpu.memory_space<vmem>>, vector<32x96xf32>
    %cst_5 = arith.constant dense<0.000000e+00> : vector<8x96xf32>
    %9 = tpu.matmul %7, %8, %cst_5 {dimension_numbers = #tpu.dot_dimension_numbers<[1], [0], [0], [1], [0, 0, 1, 1], [], []>} : vector<8x32xf32>, vector<32x96xf32>, vector<8x96xf32> -> vector<8x96xf32>
    %c0_6 = arith.constant 0 : index
    %c0_7 = arith.constant 0 : index
    %10 = vector.load %arg3[%c0_6, %c0_7] : memref<1x96xf32, #tpu.memory_space<vmem>>, vector<1x96xf32>
    %11 = vector.broadcast %10 : vector<1x96xf32> to vector<8x96xf32>
    %12 = arith.addf %9, %11 : vector<8x96xf32>
    %13 = vector.extract_strided_slice %12 {offsets = [0, 0], sizes = [8, 64], strides = [1, 1]} : vector<8x96xf32> to vector<8x64xf32>
    %14 = vector.extract_strided_slice %12 {offsets = [0, 64], sizes = [8, 32], strides = [1, 1]} : vector<8x96xf32> to vector<8x32xf32>
    %c0_8 = arith.constant 0 : index
    %c0_9 = arith.constant 0 : index
    %15 = vector.load %arg4[%c0_8, %c0_9] : memref<32x64xf32, #tpu.memory_space<vmem>>, vector<32x64xf32>
    %c0_10 = arith.constant 0 : index
    %c0_11 = arith.constant 0 : index
    %16 = vector.load %arg5[%c0_10, %c0_11] : memref<32x32xf32, #tpu.memory_space<vmem>>, vector<32x32xf32>
    %cst_12 = arith.constant 0.000000e+00 : f32
    %17 = vector.broadcast %cst_12 : f32 to vector<1x32xf32>
    %cst_13 = arith.constant dense<0.000000e+00> : vector<1x64xf32>
    %18 = tpu.matmul %17, %15, %cst_13 {dimension_numbers = #tpu.dot_dimension_numbers<[1], [0], [0], [1], [0, 0, 1, 1], [], []>} : vector<1x32xf32>, vector<32x64xf32>, vector<1x64xf32> -> vector<1x64xf32>
    %19 = vector.extract_strided_slice %13 {offsets = [0, 0], sizes = [1, 64], strides = [1, 1]} : vector<8x64xf32> to vector<1x64xf32>
    %20 = arith.addf %18, %19 : vector<1x64xf32>
    %21 = arith.negf %20 : vector<1x64xf32>
    %22 = math.exp %21 : vector<1x64xf32>
    %cst_14 = arith.constant 1.000000e+00 : f32
    %23 = vector.broadcast %cst_14 : f32 to vector<1x64xf32>
    %24 = arith.addf %23, %22 : vector<1x64xf32>
    %25 = arith.divf %23, %24 : vector<1x64xf32>
    %26 = vector.extract_strided_slice %25 {offsets = [0, 0], sizes = [1, 32], strides = [1, 1]} : vector<1x64xf32> to vector<1x32xf32>
    %27 = vector.extract_strided_slice %25 {offsets = [0, 32], sizes = [1, 32], strides = [1, 1]} : vector<1x64xf32> to vector<1x32xf32>
    %28 = arith.mulf %27, %17 : vector<1x32xf32>
    %cst_15 = arith.constant dense<0.000000e+00> : vector<1x32xf32>
    %29 = tpu.matmul %28, %16, %cst_15 {dimension_numbers = #tpu.dot_dimension_numbers<[1], [0], [0], [1], [0, 0, 1, 1], [], []>} : vector<1x32xf32>, vector<32x32xf32>, vector<1x32xf32> -> vector<1x32xf32>
    %30 = vector.extract_strided_slice %14 {offsets = [0, 0], sizes = [1, 32], strides = [1, 1]} : vector<8x32xf32> to vector<1x32xf32>
    %31 = arith.addf %29, %30 : vector<1x32xf32>
    %32 = math.tanh %31 : vector<1x32xf32>
    %cst_16 = arith.constant 1.000000e+00 : f32
    %33 = vector.broadcast %cst_16 : f32 to vector<1x32xf32>
    %34 = arith.subf %33, %26 : vector<1x32xf32>
    %35 = arith.mulf %34, %17 : vector<1x32xf32>
    %36 = arith.mulf %26, %32 : vector<1x32xf32>
    %37 = arith.addf %35, %36 : vector<1x32xf32>
    %cst_17 = arith.constant dense<0.000000e+00> : vector<1x64xf32>
    %38 = tpu.matmul %37, %15, %cst_17 {dimension_numbers = #tpu.dot_dimension_numbers<[1], [0], [0], [1], [0, 0, 1, 1], [], []>} : vector<1x32xf32>, vector<32x64xf32>, vector<1x64xf32> -> vector<1x64xf32>
    %39 = vector.extract_strided_slice %13 {offsets = [1, 0], sizes = [1, 64], strides = [1, 1]} : vector<8x64xf32> to vector<1x64xf32>
    %40 = arith.addf %38, %39 : vector<1x64xf32>
    %41 = arith.negf %40 : vector<1x64xf32>
    %42 = math.exp %41 : vector<1x64xf32>
    %cst_18 = arith.constant 1.000000e+00 : f32
    %43 = vector.broadcast %cst_18 : f32 to vector<1x64xf32>
    %44 = arith.addf %43, %42 : vector<1x64xf32>
    %45 = arith.divf %43, %44 : vector<1x64xf32>
    %46 = vector.extract_strided_slice %45 {offsets = [0, 0], sizes = [1, 32], strides = [1, 1]} : vector<1x64xf32> to vector<1x32xf32>
    %47 = vector.extract_strided_slice %45 {offsets = [0, 32], sizes = [1, 32], strides = [1, 1]} : vector<1x64xf32> to vector<1x32xf32>
    %48 = arith.mulf %47, %37 : vector<1x32xf32>
    %cst_19 = arith.constant dense<0.000000e+00> : vector<1x32xf32>
    %49 = tpu.matmul %48, %16, %cst_19 {dimension_numbers = #tpu.dot_dimension_numbers<[1], [0], [0], [1], [0, 0, 1, 1], [], []>} : vector<1x32xf32>, vector<32x32xf32>, vector<1x32xf32> -> vector<1x32xf32>
    %50 = vector.extract_strided_slice %14 {offsets = [1, 0], sizes = [1, 32], strides = [1, 1]} : vector<8x32xf32> to vector<1x32xf32>
    %51 = arith.addf %49, %50 : vector<1x32xf32>
    %52 = math.tanh %51 : vector<1x32xf32>
    %cst_20 = arith.constant 1.000000e+00 : f32
    %53 = vector.broadcast %cst_20 : f32 to vector<1x32xf32>
    %54 = arith.subf %53, %46 : vector<1x32xf32>
    %55 = arith.mulf %54, %37 : vector<1x32xf32>
    %56 = arith.mulf %46, %52 : vector<1x32xf32>
    %57 = arith.addf %55, %56 : vector<1x32xf32>
    %cst_21 = arith.constant dense<0.000000e+00> : vector<1x64xf32>
    %58 = tpu.matmul %57, %15, %cst_21 {dimension_numbers = #tpu.dot_dimension_numbers<[1], [0], [0], [1], [0, 0, 1, 1], [], []>} : vector<1x32xf32>, vector<32x64xf32>, vector<1x64xf32> -> vector<1x64xf32>
    %59 = vector.extract_strided_slice %13 {offsets = [2, 0], sizes = [1, 64], strides = [1, 1]} : vector<8x64xf32> to vector<1x64xf32>
    %60 = arith.addf %58, %59 : vector<1x64xf32>
    %61 = arith.negf %60 : vector<1x64xf32>
    %62 = math.exp %61 : vector<1x64xf32>
    %cst_22 = arith.constant 1.000000e+00 : f32
    %63 = vector.broadcast %cst_22 : f32 to vector<1x64xf32>
    %64 = arith.addf %63, %62 : vector<1x64xf32>
    %65 = arith.divf %63, %64 : vector<1x64xf32>
    %66 = vector.extract_strided_slice %65 {offsets = [0, 0], sizes = [1, 32], strides = [1, 1]} : vector<1x64xf32> to vector<1x32xf32>
    %67 = vector.extract_strided_slice %65 {offsets = [0, 32], sizes = [1, 32], strides = [1, 1]} : vector<1x64xf32> to vector<1x32xf32>
    %68 = arith.mulf %67, %57 : vector<1x32xf32>
    %cst_23 = arith.constant dense<0.000000e+00> : vector<1x32xf32>
    %69 = tpu.matmul %68, %16, %cst_23 {dimension_numbers = #tpu.dot_dimension_numbers<[1], [0], [0], [1], [0, 0, 1, 1], [], []>} : vector<1x32xf32>, vector<32x32xf32>, vector<1x32xf32> -> vector<1x32xf32>
    %70 = vector.extract_strided_slice %14 {offsets = [2, 0], sizes = [1, 32], strides = [1, 1]} : vector<8x32xf32> to vector<1x32xf32>
    %71 = arith.addf %69, %70 : vector<1x32xf32>
    %72 = math.tanh %71 : vector<1x32xf32>
    %cst_24 = arith.constant 1.000000e+00 : f32
    %73 = vector.broadcast %cst_24 : f32 to vector<1x32xf32>
    %74 = arith.subf %73, %66 : vector<1x32xf32>
    %75 = arith.mulf %74, %57 : vector<1x32xf32>
    %76 = arith.mulf %66, %72 : vector<1x32xf32>
    %77 = arith.addf %75, %76 : vector<1x32xf32>
    %cst_25 = arith.constant dense<0.000000e+00> : vector<1x64xf32>
    %78 = tpu.matmul %77, %15, %cst_25 {dimension_numbers = #tpu.dot_dimension_numbers<[1], [0], [0], [1], [0, 0, 1, 1], [], []>} : vector<1x32xf32>, vector<32x64xf32>, vector<1x64xf32> -> vector<1x64xf32>
    %79 = vector.extract_strided_slice %13 {offsets = [3, 0], sizes = [1, 64], strides = [1, 1]} : vector<8x64xf32> to vector<1x64xf32>
    %80 = arith.addf %78, %79 : vector<1x64xf32>
    %81 = arith.negf %80 : vector<1x64xf32>
    %82 = math.exp %81 : vector<1x64xf32>
    %cst_26 = arith.constant 1.000000e+00 : f32
    %83 = vector.broadcast %cst_26 : f32 to vector<1x64xf32>
    %84 = arith.addf %83, %82 : vector<1x64xf32>
    %85 = arith.divf %83, %84 : vector<1x64xf32>
    %86 = vector.extract_strided_slice %85 {offsets = [0, 0], sizes = [1, 32], strides = [1, 1]} : vector<1x64xf32> to vector<1x32xf32>
    %87 = vector.extract_strided_slice %85 {offsets = [0, 32], sizes = [1, 32], strides = [1, 1]} : vector<1x64xf32> to vector<1x32xf32>
    %88 = arith.mulf %87, %77 : vector<1x32xf32>
    %cst_27 = arith.constant dense<0.000000e+00> : vector<1x32xf32>
    %89 = tpu.matmul %88, %16, %cst_27 {dimension_numbers = #tpu.dot_dimension_numbers<[1], [0], [0], [1], [0, 0, 1, 1], [], []>} : vector<1x32xf32>, vector<32x32xf32>, vector<1x32xf32> -> vector<1x32xf32>
    %90 = vector.extract_strided_slice %14 {offsets = [3, 0], sizes = [1, 32], strides = [1, 1]} : vector<8x32xf32> to vector<1x32xf32>
    %91 = arith.addf %89, %90 : vector<1x32xf32>
    %92 = math.tanh %91 : vector<1x32xf32>
    %cst_28 = arith.constant 1.000000e+00 : f32
    %93 = vector.broadcast %cst_28 : f32 to vector<1x32xf32>
    %94 = arith.subf %93, %86 : vector<1x32xf32>
    %95 = arith.mulf %94, %77 : vector<1x32xf32>
    %96 = arith.mulf %86, %92 : vector<1x32xf32>
    %97 = arith.addf %95, %96 : vector<1x32xf32>
    %cst_29 = arith.constant dense<0.000000e+00> : vector<1x64xf32>
    %98 = tpu.matmul %97, %15, %cst_29 {dimension_numbers = #tpu.dot_dimension_numbers<[1], [0], [0], [1], [0, 0, 1, 1], [], []>} : vector<1x32xf32>, vector<32x64xf32>, vector<1x64xf32> -> vector<1x64xf32>
    %99 = vector.extract_strided_slice %13 {offsets = [4, 0], sizes = [1, 64], strides = [1, 1]} : vector<8x64xf32> to vector<1x64xf32>
    %100 = arith.addf %98, %99 : vector<1x64xf32>
    %101 = arith.negf %100 : vector<1x64xf32>
    %102 = math.exp %101 : vector<1x64xf32>
    %cst_30 = arith.constant 1.000000e+00 : f32
    %103 = vector.broadcast %cst_30 : f32 to vector<1x64xf32>
    %104 = arith.addf %103, %102 : vector<1x64xf32>
    %105 = arith.divf %103, %104 : vector<1x64xf32>
    %106 = vector.extract_strided_slice %105 {offsets = [0, 0], sizes = [1, 32], strides = [1, 1]} : vector<1x64xf32> to vector<1x32xf32>
    %107 = vector.extract_strided_slice %105 {offsets = [0, 32], sizes = [1, 32], strides = [1, 1]} : vector<1x64xf32> to vector<1x32xf32>
    %108 = arith.mulf %107, %97 : vector<1x32xf32>
    %cst_31 = arith.constant dense<0.000000e+00> : vector<1x32xf32>
    %109 = tpu.matmul %108, %16, %cst_31 {dimension_numbers = #tpu.dot_dimension_numbers<[1], [0], [0], [1], [0, 0, 1, 1], [], []>} : vector<1x32xf32>, vector<32x32xf32>, vector<1x32xf32> -> vector<1x32xf32>
    %110 = vector.extract_strided_slice %14 {offsets = [4, 0], sizes = [1, 32], strides = [1, 1]} : vector<8x32xf32> to vector<1x32xf32>
    %111 = arith.addf %109, %110 : vector<1x32xf32>
    %112 = math.tanh %111 : vector<1x32xf32>
    %cst_32 = arith.constant 1.000000e+00 : f32
    %113 = vector.broadcast %cst_32 : f32 to vector<1x32xf32>
    %114 = arith.subf %113, %106 : vector<1x32xf32>
    %115 = arith.mulf %114, %97 : vector<1x32xf32>
    %116 = arith.mulf %106, %112 : vector<1x32xf32>
    %117 = arith.addf %115, %116 : vector<1x32xf32>
    %cst_33 = arith.constant dense<0.000000e+00> : vector<1x64xf32>
    %118 = tpu.matmul %117, %15, %cst_33 {dimension_numbers = #tpu.dot_dimension_numbers<[1], [0], [0], [1], [0, 0, 1, 1], [], []>} : vector<1x32xf32>, vector<32x64xf32>, vector<1x64xf32> -> vector<1x64xf32>
    %119 = vector.extract_strided_slice %13 {offsets = [5, 0], sizes = [1, 64], strides = [1, 1]} : vector<8x64xf32> to vector<1x64xf32>
    %120 = arith.addf %118, %119 : vector<1x64xf32>
    %121 = arith.negf %120 : vector<1x64xf32>
    %122 = math.exp %121 : vector<1x64xf32>
    %cst_34 = arith.constant 1.000000e+00 : f32
    %123 = vector.broadcast %cst_34 : f32 to vector<1x64xf32>
    %124 = arith.addf %123, %122 : vector<1x64xf32>
    %125 = arith.divf %123, %124 : vector<1x64xf32>
    %126 = vector.extract_strided_slice %125 {offsets = [0, 0], sizes = [1, 32], strides = [1, 1]} : vector<1x64xf32> to vector<1x32xf32>
    %127 = vector.extract_strided_slice %125 {offsets = [0, 32], sizes = [1, 32], strides = [1, 1]} : vector<1x64xf32> to vector<1x32xf32>
    %128 = arith.mulf %127, %117 : vector<1x32xf32>
    %cst_35 = arith.constant dense<0.000000e+00> : vector<1x32xf32>
    %129 = tpu.matmul %128, %16, %cst_35 {dimension_numbers = #tpu.dot_dimension_numbers<[1], [0], [0], [1], [0, 0, 1, 1], [], []>} : vector<1x32xf32>, vector<32x32xf32>, vector<1x32xf32> -> vector<1x32xf32>
    %130 = vector.extract_strided_slice %14 {offsets = [5, 0], sizes = [1, 32], strides = [1, 1]} : vector<8x32xf32> to vector<1x32xf32>
    %131 = arith.addf %129, %130 : vector<1x32xf32>
    %132 = math.tanh %131 : vector<1x32xf32>
    %cst_36 = arith.constant 1.000000e+00 : f32
    %133 = vector.broadcast %cst_36 : f32 to vector<1x32xf32>
    %134 = arith.subf %133, %126 : vector<1x32xf32>
    %135 = arith.mulf %134, %117 : vector<1x32xf32>
    %136 = arith.mulf %126, %132 : vector<1x32xf32>
    %137 = arith.addf %135, %136 : vector<1x32xf32>
    %cst_37 = arith.constant dense<0.000000e+00> : vector<1x64xf32>
    %138 = tpu.matmul %137, %15, %cst_37 {dimension_numbers = #tpu.dot_dimension_numbers<[1], [0], [0], [1], [0, 0, 1, 1], [], []>} : vector<1x32xf32>, vector<32x64xf32>, vector<1x64xf32> -> vector<1x64xf32>
    %139 = vector.extract_strided_slice %13 {offsets = [6, 0], sizes = [1, 64], strides = [1, 1]} : vector<8x64xf32> to vector<1x64xf32>
    %140 = arith.addf %138, %139 : vector<1x64xf32>
    %141 = arith.negf %140 : vector<1x64xf32>
    %142 = math.exp %141 : vector<1x64xf32>
    %cst_38 = arith.constant 1.000000e+00 : f32
    %143 = vector.broadcast %cst_38 : f32 to vector<1x64xf32>
    %144 = arith.addf %143, %142 : vector<1x64xf32>
    %145 = arith.divf %143, %144 : vector<1x64xf32>
    %146 = vector.extract_strided_slice %145 {offsets = [0, 0], sizes = [1, 32], strides = [1, 1]} : vector<1x64xf32> to vector<1x32xf32>
    %147 = vector.extract_strided_slice %145 {offsets = [0, 32], sizes = [1, 32], strides = [1, 1]} : vector<1x64xf32> to vector<1x32xf32>
    %148 = arith.mulf %147, %137 : vector<1x32xf32>
    %cst_39 = arith.constant dense<0.000000e+00> : vector<1x32xf32>
    %149 = tpu.matmul %148, %16, %cst_39 {dimension_numbers = #tpu.dot_dimension_numbers<[1], [0], [0], [1], [0, 0, 1, 1], [], []>} : vector<1x32xf32>, vector<32x32xf32>, vector<1x32xf32> -> vector<1x32xf32>
    %150 = vector.extract_strided_slice %14 {offsets = [6, 0], sizes = [1, 32], strides = [1, 1]} : vector<8x32xf32> to vector<1x32xf32>
    %151 = arith.addf %149, %150 : vector<1x32xf32>
    %152 = math.tanh %151 : vector<1x32xf32>
    %cst_40 = arith.constant 1.000000e+00 : f32
    %153 = vector.broadcast %cst_40 : f32 to vector<1x32xf32>
    %154 = arith.subf %153, %146 : vector<1x32xf32>
    %155 = arith.mulf %154, %137 : vector<1x32xf32>
    %156 = arith.mulf %146, %152 : vector<1x32xf32>
    %157 = arith.addf %155, %156 : vector<1x32xf32>
    %cst_41 = arith.constant dense<0.000000e+00> : vector<1x64xf32>
    %158 = tpu.matmul %157, %15, %cst_41 {dimension_numbers = #tpu.dot_dimension_numbers<[1], [0], [0], [1], [0, 0, 1, 1], [], []>} : vector<1x32xf32>, vector<32x64xf32>, vector<1x64xf32> -> vector<1x64xf32>
    %159 = vector.extract_strided_slice %13 {offsets = [7, 0], sizes = [1, 64], strides = [1, 1]} : vector<8x64xf32> to vector<1x64xf32>
    %160 = arith.addf %158, %159 : vector<1x64xf32>
    %161 = arith.negf %160 : vector<1x64xf32>
    %162 = math.exp %161 : vector<1x64xf32>
    %cst_42 = arith.constant 1.000000e+00 : f32
    %163 = vector.broadcast %cst_42 : f32 to vector<1x64xf32>
    %164 = arith.addf %163, %162 : vector<1x64xf32>
    %165 = arith.divf %163, %164 : vector<1x64xf32>
    %166 = vector.extract_strided_slice %165 {offsets = [0, 0], sizes = [1, 32], strides = [1, 1]} : vector<1x64xf32> to vector<1x32xf32>
    %167 = vector.extract_strided_slice %165 {offsets = [0, 32], sizes = [1, 32], strides = [1, 1]} : vector<1x64xf32> to vector<1x32xf32>
    %168 = arith.mulf %167, %157 : vector<1x32xf32>
    %cst_43 = arith.constant dense<0.000000e+00> : vector<1x32xf32>
    %169 = tpu.matmul %168, %16, %cst_43 {dimension_numbers = #tpu.dot_dimension_numbers<[1], [0], [0], [1], [0, 0, 1, 1], [], []>} : vector<1x32xf32>, vector<32x32xf32>, vector<1x32xf32> -> vector<1x32xf32>
    %170 = vector.extract_strided_slice %14 {offsets = [7, 0], sizes = [1, 32], strides = [1, 1]} : vector<8x32xf32> to vector<1x32xf32>
    %171 = arith.addf %169, %170 : vector<1x32xf32>
    %172 = math.tanh %171 : vector<1x32xf32>
    %cst_44 = arith.constant 1.000000e+00 : f32
    %173 = vector.broadcast %cst_44 : f32 to vector<1x32xf32>
    %174 = arith.subf %173, %166 : vector<1x32xf32>
    %175 = arith.mulf %174, %157 : vector<1x32xf32>
    %176 = arith.mulf %166, %172 : vector<1x32xf32>
    %177 = arith.addf %175, %176 : vector<1x32xf32>
    %c0_45 = arith.constant 0 : index
    %c0_46 = arith.constant 0 : index
    %178 = vector.load %arg6[%c0_45, %c0_46] : memref<32x128xf32, #tpu.memory_space<vmem>>, vector<32x128xf32>
    %cst_47 = arith.constant dense<0.000000e+00> : vector<1x128xf32>
    %179 = tpu.matmul %177, %178, %cst_47 {dimension_numbers = #tpu.dot_dimension_numbers<[1], [0], [0], [1], [0, 0, 1, 1], [], []>} : vector<1x32xf32>, vector<32x128xf32>, vector<1x128xf32> -> vector<1x128xf32>
    %c0_48 = arith.constant 0 : index
    %c0_49 = arith.constant 0 : index
    %180 = vector.load %arg7[%c0_48, %c0_49] : memref<1x128xf32, #tpu.memory_space<vmem>>, vector<1x128xf32>
    %181 = arith.addf %179, %180 : vector<1x128xf32>
    %182 = tpu.reduce_index %181 {axis = 1 : i32, kind = #tpu.reduction_kind<arg_max>} : vector<1x128xf32> -> vector<1xi32>
    %183 = vector.extract %182[0] : i32 from vector<1xi32>
    %c0_50 = arith.constant 0 : index
    %184 = memref.load %arg8[%c0_50] : memref<1xi32, #tpu.memory_space<smem>>
    memref.store %183, %arg8[%c0_50] : memref<1xi32, #tpu.memory_space<smem>>
    return
  }
}

</mosaic_0001>

<llo_original>
// kernel: tpu_custom_call.1
$region0: #{tpu_custom_call.1}
  #allocation0 [shape = 'u32[]', space=smem, size = 0x4, offset = 0x4, fixed_abs, tag = 'smem constant byte address 0x4 - core index']
  #allocation1 [shape = 'u32[144,128]{1,0:T(1,128)}', space=vmem, size = 0x12000, scoped, tag = 'internal scratch']
  %s0 = inlined_call_operand.vmem [shape: s32[8,1], index: 0, kind: input, shape index: {}]
  %s1 = inlined_call_operand.hbm [shape: f32[20,32], index: 1, kind: input, shape index: {}]
  %s2 = inlined_call_operand.hbm [shape: f32[32,96], index: 2, kind: input, shape index: {}]
  %s3 = inlined_call_operand.vmem [shape: f32[1,96], index: 3, kind: input, shape index: {}]
  %s4 = inlined_call_operand.hbm [shape: f32[32,64], index: 4, kind: input, shape index: {}]
  %s5 = inlined_call_operand.hbm [shape: f32[32,32], index: 5, kind: input, shape index: {}]
  %s6 = inlined_call_operand.hbm [shape: f32[32,128], index: 6, kind: input, shape index: {}]
  %s7 = inlined_call_operand.vmem [shape: f32[1,128], index: 7, kind: input, shape index: {}]
  %s8 = inlined_call_operand.hbm [shape: s32[1], index: 8, kind: output, shape index: {}]
  %s9 = sld [smem:[#allocation0]]
  $region62: #{tpu_custom_call.1} parent=0
    _
  %s11 = ssub.s32 1, %s9
  %s12 = scalar_select 0, %s11, %s9
  $region1: #{tpu_custom_call.1} parent=0
    #allocation2 [shape = 'u8[12288]{0}', space=vmem, size = 0x3000, scoped, tag = 'input window, operand 1, single buffered']
    #allocation3 [shape = 's32[1]{0}', space=sflag, size = 0x4, scoped, tag = 'scoped memory for tpu_custom_call.1']
    #allocation4 [shape = 's32[1]{0}', space=sflag, size = 0x4, scoped, tag = 'scoped memory for tpu_custom_call.1']
    #allocation5 [shape = 'u8[16384]{0}', space=vmem, size = 0x4000, scoped, tag = 'input window, operand 2, single buffered']
    #allocation6 [shape = 's32[1]{0}', space=sflag, size = 0x4, scoped, tag = 'scoped memory for tpu_custom_call.1']
    #allocation7 [shape = 'u8[16384]{0}', space=vmem, size = 0x4000, scoped, tag = 'input window, operand 4, single buffered']
    #allocation8 [shape = 'u8[16384]{0}', space=vmem, size = 0x4000, scoped, tag = 'input window, operand 5, single buffered']
    #allocation9 [shape = 's32[1]{0}', space=sflag, size = 0x4, scoped, tag = 'scoped memory for tpu_custom_call.1']
    #allocation10 [shape = 'u8[16384]{0}', space=vmem, size = 0x4000, scoped, tag = 'input window, operand 6, single buffered']
    #allocation11 [shape = 'u8[512]{0}', space=smem, size = 0x200, scoped, tag = 'output window, operand 0, single buffered']
    %13 = vsyncpa [#allocation3], 0
    %14 = vsyncpa [#allocation6], 0
    %15 = vsyncpa [#allocation9], 0
    %16 = vsyncpa [#allocation4], 0
    // Predicated region
    $region2: #{tpu_custom_call.1} parent=1 // pred_check
      _
    $region3: #{tpu_custom_call.1} parent=1 // pred_check_branch
      %18 = sbr.rel (0) target = $region5
    $region4: #{tpu_custom_call.1} parent=1 // pred_region
      _
    $region5: #{tpu_custom_call.1} parent=1 // pred_fallthru
      _
    // Predicated region
    $region6: #{tpu_custom_call.1} parent=1 // pred_check
      _
    $region7: #{tpu_custom_call.1} parent=1 // pred_check_branch
      %20 = sbr.rel (0) target = $region9
    $region8: #{tpu_custom_call.1} parent=1 // pred_region
      %s22 = ssub.s32 384, 384
      %23 = vsyncadd [#allocation3], %s22
      %s24 = sshll.u32 [#allocation2], 4
      %s25 = int_to_ptr.vmem [resolvable:$true] %s24
      %30 = dma.hbm_to_vmem [thread:$0]  %s1, 384, %s25, [#allocation3], 128, 128, 8
    $region9: #{tpu_custom_call.1} parent=1 // pred_fallthru
      _
    // Predicated region
    $region10: #{tpu_custom_call.1} parent=1 // pred_check
      _
    $region11: #{tpu_custom_call.1} parent=1 // pred_check_branch
      %32 = sbr.rel (0) target = $region13
    $region12: #{tpu_custom_call.1} parent=1 // pred_region
      %s34 = ssub.s32 512, 512
      %35 = vsyncadd [#allocation6], %s34
      %s36 = sshll.u32 [#allocation5], 4
      %s37 = int_to_ptr.vmem [resolvable:$true] %s36
      %42 = dma.hbm_to_vmem [thread:$0]  %s2, 512, %s37, [#allocation6], 128, 128, 8
    $region13: #{tpu_custom_call.1} parent=1 // pred_fallthru
      _
    // Predicated region
    $region14: #{tpu_custom_call.1} parent=1 // pred_check
      _
    $region15: #{tpu_custom_call.1} parent=1 // pred_check_branch
      %44 = sbr.rel (0) target = $region17
    $region16: #{tpu_custom_call.1} parent=1 // pred_region
      _
    $region17: #{tpu_custom_call.1} parent=1 // pred_fallthru
      _
    // Predicated region
    $region18: #{tpu_custom_call.1} parent=1 // pred_check
      _
    $region19: #{tpu_custom_call.1} parent=1 // pred_check_branch
      %46 = sbr.rel (0) target = $region21
    $region20: #{tpu_custom_call.1} parent=1 // pred_region
      %s48 = ssub.s32 512, 512
      %49 = vsyncadd [#allocation6], %s48
      %s50 = sshll.u32 [#allocation7], 4
      %s51 = int_to_ptr.vmem [resolvable:$true] %s50
      %56 = dma.hbm_to_vmem [thread:$0]  %s4, 512, %s51, [#allocation6], 128, 128, 8
    $region21: #{tpu_custom_call.1} parent=1 // pred_fallthru
      _
    // Predicated region
    $region22: #{tpu_custom_call.1} parent=1 // pred_check
      _
    $region23: #{tpu_custom_call.1} parent=1 // pred_check_branch
      %58 = sbr.rel (0) target = $region25
    $region24: #{tpu_custom_call.1} parent=1 // pred_region
      %s60 = ssub.s32 512, 512
      %61 = vsyncadd [#allocation9], %s60
      %s62 = sshll.u32 [#allocation8], 4
      %s63 = int_to_ptr.vmem [resolvable:$true] %s62
      %68 = dma.hbm_to_vmem [thread:$0]  %s5, 512, %s63, [#allocation9], 128, 128, 8
    $region25: #{tpu_custom_call.1} parent=1 // pred_fallthru
      _
    // Predicated region
    $region26: #{tpu_custom_call.1} parent=1 // pred_check
      _
    $region27: #{tpu_custom_call.1} parent=1 // pred_check_branch
      %70 = sbr.rel (0) target = $region29
    $region28: #{tpu_custom_call.1} parent=1 // pred_region
      %s72 = ssub.s32 512, 512
      %73 = vsyncadd [#allocation9], %s72
      %s74 = sshll.u32 [#allocation10], 4
      %s75 = int_to_ptr.vmem [resolvable:$true] %s74
      %80 = dma.hbm_to_vmem [thread:$0]  %s6, 512, %s75, [#allocation9], 128, 128, 8
    $region29: #{tpu_custom_call.1} parent=1 // pred_fallthru
      _
    // Predicated region
    $region30: #{tpu_custom_call.1} parent=1 // pred_check
      _
    $region31: #{tpu_custom_call.1} parent=1 // pred_check_branch
      %82 = sbr.rel (0) target = $region33
    $region32: #{tpu_custom_call.1} parent=1 // pred_region
      _
    $region33: #{tpu_custom_call.1} parent=1 // pred_fallthru
      _
    // Predicated region
    $region34: #{tpu_custom_call.1} parent=1 // pred_check
      _
    $region35: #{tpu_custom_call.1} parent=1 // pred_check_branch
      %84 = sbr.rel (0) target = $region37
    $region36: #{tpu_custom_call.1} parent=1 // pred_region
      %85 = dma.done [#allocation3], 384
    $region37: #{tpu_custom_call.1} parent=1 // pred_fallthru
      _
    // Predicated region
    $region38: #{tpu_custom_call.1} parent=1 // pred_check
      _
    $region39: #{tpu_custom_call.1} parent=1 // pred_check_branch
      %87 = sbr.rel (0) target = $region41
    $region40: #{tpu_custom_call.1} parent=1 // pred_region
      %88 = dma.done [#allocation6], 512
    $region41: #{tpu_custom_call.1} parent=1 // pred_fallthru
      _
    // Predicated region
    $region42: #{tpu_custom_call.1} parent=1 // pred_check
      _
    $region43: #{tpu_custom_call.1} parent=1 // pred_check_branch
      %90 = sbr.rel (0) target = $region45
    $region44: #{tpu_custom_call.1} parent=1 // pred_region
      %91 = dma.done [#allocation6], 512
    $region45: #{tpu_custom_call.1} parent=1 // pred_fallthru
      _
    // Predicated region
    $region46: #{tpu_custom_call.1} parent=1 // pred_check
      _
    $region47: #{tpu_custom_call.1} parent=1 // pred_check_branch
      %93 = sbr.rel (0) target = $region49
    $region48: #{tpu_custom_call.1} parent=1 // pred_region
      %94 = dma.done [#allocation9], 512
    $region49: #{tpu_custom_call.1} parent=1 // pred_fallthru
      _
    // Predicated region
    $region50: #{tpu_custom_call.1} parent=1 // pred_check
      _
    $region51: #{tpu_custom_call.1} parent=1 // pred_check_branch
      %96 = sbr.rel (0) target = $region53
    $region52: #{tpu_custom_call.1} parent=1 // pred_region
      %97 = dma.done [#allocation9], 512
    $region53: #{tpu_custom_call.1} parent=1 // pred_fallthru
      _
    %v98 = vld [vmem:[%s0] sm:$0xff]
    %v99 = vlaneseq
    %v100 = vand.u32 %v99, 127
    %101 = vset.pattern.permute.xlu0 0
    %102 = vperm.xlu0 %101, %v98
    %v103 = vpop.permute.xlu0 %102
    %vm104 = vcmp.eq.s32.totalorder %v100, %v103
    %v105 = vsel %vm104, 1, 0
    %v106 = vcvt.s32.f32 %v105
    %v107 = vld [vmem:[#allocation2] sm:$0xff]
    %v108 = vld [vmem:[#allocation2 + $0x8] sm:$0xff]
    %v109 = vld [vmem:[#allocation2 + $0x10] sm:$0xf]
    %vm110 = vcmask 162816
    %v112 = vsel %vm110, %v106, 0
    %vm114 = vcmask 1043456
    %v116 = vsel %vm114, %v109, 0
    %118 = vmatprep.subr.mxu0 0.0
    %119 = vmatpush1.msra.mxu0 %v107
    %120 = vmatprep.subr.mxu0 0.0
    %121 = vmatpush1.msra.mxu0 %v108
    %122 = vmatprep.subr.mxu0 0.0
    %123 = vmatpush1.msra.mxu0 %v116
    %124 = vmatprep.subr.mxu0 0.0
    %125 = vmatpush1.msra.mxu0 0.0
    %126 = vmatprep.subr.mxu0 0.0
    %127 = vmatpush1.msra.mxu0 0.0
    %128 = vmatprep.subr.mxu0 0.0
    %129 = vmatpush1.msra.mxu0 0.0
    %130 = vmatprep.subr.mxu0 0.0
    %131 = vmatpush1.msra.mxu0 0.0
    %132 = vmatprep.subr.mxu0 0.0
    %133 = vmatpush1.msra.mxu0 0.0
    %134 = vmatprep.subr.mxu0 0.0
    %135 = vmatpush1.msra.mxu0 0.0
    %136 = vmatprep.subr.mxu0 0.0
    %137 = vmatpush1.msra.mxu0 0.0
    %138 = vmatprep.subr.mxu0 0.0
    %139 = vmatpush1.msra.mxu0 0.0
    %140 = vmatprep.subr.mxu0 0.0
    %141 = vmatpush1.msra.mxu0 0.0
    %142 = vmatprep.subr.mxu0 0.0
    %143 = vmatpush1.msra.mxu0 0.0
    %144 = vmatprep.subr.mxu0 0.0
    %145 = vmatpush1.msra.mxu0 0.0
    %146 = vmatprep.subr.mxu0 0.0
    %147 = vmatpush1.msra.mxu0 0.0
    %148 = vmatprep.subr.mxu0 0.0
    %149 = vmatpush1.msra.mxu0 0.0
    %150 = vmatprep.subr.mxu0 0.0
    %151 = vmatpush1.msra.mxu0 0.0
    %152 = vmatprep.subr.mxu0 0.0
    %153 = vmatpush1.msra.mxu0 0.0
    %154 = vmatprep.subr.mxu0 0.0
    %155 = vmatpush1.msra.mxu0 0.0
    %156 = vmatprep.subr.mxu0 0.0
    %157 = vmatpush1.msra.mxu0 0.0
    %158 = vmatprep.subr.mxu0 0.0
    %159 = vmatpush1.msra.mxu0 0.0
    %160 = vmatprep.subr.mxu0 0.0
    %161 = vmatpush1.msra.mxu0 0.0
    %162 = vmatprep.subr.mxu0 0.0
    %163 = vmatpush1.msra.mxu0 0.0
    %164 = vmatprep.subr.mxu0 0.0
    %165 = vmatpush1.msra.mxu0 0.0
    %166 = vmatprep.subr.mxu0 0.0
    %167 = vmatpush1.msra.mxu0 0.0
    %168 = vmatprep.subr.mxu0 0.0
    %169 = vmatpush1.msra.mxu0 0.0
    %170 = vmatprep.subr.mxu0 0.0
    %171 = vmatpush1.msra.mxu0 0.0
    %172 = vmatprep.subr.mxu0 0.0
    %173 = vmatpush1.msra.mxu0 0.0
    %174 = vmatprep.subr.mxu0 0.0
    %175 = vmatpush1.msra.mxu0 0.0
    %176 = vmatprep.subr.mxu0 0.0
    %177 = vmatpush1.msra.mxu0 0.0
    %178 = vmatprep.subr.mxu0 0.0
    %179 = vmatpush1.msra.mxu0 0.0
    %180 = vmatprep.subr.mxu0 0.0
    %181 = vmatpush1.msra.mxu0 0.0
    %182 = vmatprep.mubr.f32.mxu0 0.0
    %183 = vmatmul.mubr.f32.gmra.mrb[0].mxu0 %v112
    %v184 = vpop.f32.mrb[0].mxu0
    %v185 = vadd.f32 0.0, %v184
    %v186 = vpop.f32.mrb[0].mxu0
    %187 = vdwg.mxu0
    %v188 = vld [vmem:[#allocation5] sm:$0xff]
    %v189 = vld [vmem:[#allocation5 + $0x8] sm:$0xff]
    %v190 = vld [vmem:[#allocation5 + $0x10] sm:$0xff]
    %v191 = vld [vmem:[#allocation5 + $0x18] sm:$0xff]
    %v192 = vld [vmem:[%s3] sm:$0x1]
    %v194 = vlaneseq
    %v195 = vshrl.u32 %v194, 7
    %v196 = vsub.s32 0, %v195
    %v197 = vrot.slane %v192, %v196
    %vm199 = vcmask 261120
    %v201 = vsel %vm199, %v185, 0
    %203 = vmatprep.subr.mxu0 0.0
    %204 = vmatpush1.msra.mxu0 %v188
    %205 = vmatprep.subr.mxu0 0.0
    %206 = vmatpush1.msra.mxu0 %v189
    %207 = vmatprep.subr.mxu0 0.0
    %208 = vmatpush1.msra.mxu0 %v190
    %209 = vmatprep.subr.mxu0 0.0
    %210 = vmatpush1.msra.mxu0 %v191
    %211 = vmatprep.subr.mxu0 0.0
    %212 = vmatpush1.msra.mxu0 0.0
    %213 = vmatprep.subr.mxu0 0.0
    %214 = vmatpush1.msra.mxu0 0.0
    %215 = vmatprep.subr.mxu0 0.0
    %216 = vmatpush1.msra.mxu0 0.0
    %217 = vmatprep.subr.mxu0 0.0
    %218 = vmatpush1.msra.mxu0 0.0
    %219 = vmatprep.subr.mxu0 0.0
    %220 = vmatpush1.msra.mxu0 0.0
    %221 = vmatprep.subr.mxu0 0.0
    %222 = vmatpush1.msra.mxu0 0.0
    %223 = vmatprep.subr.mxu0 0.0
    %224 = vmatpush1.msra.mxu0 0.0
    %225 = vmatprep.subr.mxu0 0.0
    %226 = vmatpush1.msra.mxu0 0.0
    %227 = vmatprep.subr.mxu0 0.0
    %228 = vmatpush1.msra.mxu0 0.0
    %229 = vmatprep.subr.mxu0 0.0
    %230 = vmatpush1.msra.mxu0 0.0
    %231 = vmatprep.subr.mxu0 0.0
    %232 = vmatpush1.msra.mxu0 0.0
    %233 = vmatprep.subr.mxu0 0.0
    %234 = vmatpush1.msra.mxu0 0.0
    %235 = vmatprep.subr.mxu0 0.0
    %236 = vmatpush1.msra.mxu0 0.0
    %237 = vmatprep.subr.mxu0 0.0
    %238 = vmatpush1.msra.mxu0 0.0
    %239 = vmatprep.subr.mxu0 0.0
    %240 = vmatpush1.msra.mxu0 0.0
    %241 = vmatprep.subr.mxu0 0.0
    %242 = vmatpush1.msra.mxu0 0.0
    %243 = vmatprep.subr.mxu0 0.0
    %244 = vmatpush1.msra.mxu0 0.0
    %245 = vmatprep.subr.mxu0 0.0
    %246 = vmatpush1.msra.mxu0 0.0
    %247 = vmatprep.subr.mxu0 0.0
    %248 = vmatpush1.msra.mxu0 0.0
    %249 = vmatprep.subr.mxu0 0.0
    %250 = vmatpush1.msra.mxu0 0.0
    %251 = vmatprep.subr.mxu0 0.0
    %252 = vmatpush1.msra.mxu0 0.0
    %253 = vmatprep.subr.mxu0 0.0
    %254 = vmatpush1.msra.mxu0 0.0
    %255 = vmatprep.subr.mxu0 0.0
    %256 = vmatpush1.msra.mxu0 0.0
    %257 = vmatprep.subr.mxu0 0.0
    %258 = vmatpush1.msra.mxu0 0.0
    %259 = vmatprep.subr.mxu0 0.0
    %260 = vmatpush1.msra.mxu0 0.0
    %261 = vmatprep.subr.mxu0 0.0
    %262 = vmatpush1.msra.mxu0 0.0
    %263 = vmatprep.subr.mxu0 0.0
    %264 = vmatpush1.msra.mxu0 0.0
    %265 = vmatprep.subr.mxu0 0.0
    %266 = vmatpush1.msra.mxu0 0.0
    %267 = vmatprep.mubr.f32.mxu0 0.0
    %268 = vmatmul.mubr.f32.gmra.mrb[0].mxu0 %v201
    %v269 = vpop.f32.mrb[0].mxu0
    %v270 = vadd.f32 %v197, %v269
    %v271 = vpop.f32.mrb[0].mxu0
    %272 = vdwg.mxu0
    %v273 = vld [vmem:[#allocation7] sm:$0xff]
    %v274 = vld [vmem:[#allocation7 + $0x8] sm:$0xff]
    %v275 = vld [vmem:[#allocation7 + $0x10] sm:$0xff]
    %v276 = vld [vmem:[#allocation7 + $0x18] sm:$0xff]
    %v277 = vld [vmem:[#allocation8] sm:$0xff]
    %v278 = vld [vmem:[#allocation8 + $0x8] sm:$0xff]
    %v279 = vld [vmem:[#allocation8 + $0x10] sm:$0xff]
    %v280 = vld [vmem:[#allocation8 + $0x18] sm:$0xff]
    %v282 = vsel %vm199, 0.0, 0
    %284 = vmatprep.subr.mxu0 0.0
    %285 = vmatpush1.msra.mxu0 %v273
    %286 = vmatprep.subr.mxu0 0.0
    %287 = vmatpush1.msra.mxu0 %v274
    %288 = vmatprep.subr.mxu0 0.0
    %289 = vmatpush1.msra.mxu0 %v275
    %290 = vmatprep.subr.mxu0 0.0
    %291 = vmatpush1.msra.mxu0 %v276
    %292 = vmatprep.subr.mxu0 0.0
    %293 = vmatpush1.msra.mxu0 0.0
    %294 = vmatprep.subr.mxu0 0.0
    %295 = vmatpush1.msra.mxu0 0.0
    %296 = vmatprep.subr.mxu0 0.0
    %297 = vmatpush1.msra.mxu0 0.0
    %298 = vmatprep.subr.mxu0 0.0
    %299 = vmatpush1.msra.mxu0 0.0
    %300 = vmatprep.subr.mxu0 0.0
    %301 = vmatpush1.msra.mxu0 0.0
    %302 = vmatprep.subr.mxu0 0.0
    %303 = vmatpush1.msra.mxu0 0.0
    %304 = vmatprep.subr.mxu0 0.0
    %305 = vmatpush1.msra.mxu0 0.0
    %306 = vmatprep.subr.mxu0 0.0
    %307 = vmatpush1.msra.mxu0 0.0
    %308 = vmatprep.subr.mxu0 0.0
    %309 = vmatpush1.msra.mxu0 0.0
    %310 = vmatprep.subr.mxu0 0.0
    %311 = vmatpush1.msra.mxu0 0.0
    %312 = vmatprep.subr.mxu0 0.0
    %313 = vmatpush1.msra.mxu0 0.0
    %314 = vmatprep.subr.mxu0 0.0
    %315 = vmatpush1.msra.mxu0 0.0
    %316 = vmatprep.subr.mxu0 0.0
    %317 = vmatpush1.msra.mxu0 0.0
    %318 = vmatprep.subr.mxu0 0.0
    %319 = vmatpush1.msra.mxu0 0.0
    %320 = vmatprep.subr.mxu0 0.0
    %321 = vmatpush1.msra.mxu0 0.0
    %322 = vmatprep.subr.mxu0 0.0
    %323 = vmatpush1.msra.mxu0 0.0
    %324 = vmatprep.subr.mxu0 0.0
    %325 = vmatpush1.msra.mxu0 0.0
    %326 = vmatprep.subr.mxu0 0.0
    %327 = vmatpush1.msra.mxu0 0.0
    %328 = vmatprep.subr.mxu0 0.0
    %329 = vmatpush1.msra.mxu0 0.0
    %330 = vmatprep.subr.mxu0 0.0
    %331 = vmatpush1.msra.mxu0 0.0
    %332 = vmatprep.subr.mxu0 0.0
    %333 = vmatpush1.msra.mxu0 0.0
    %334 = vmatprep.subr.mxu0 0.0
    %335 = vmatpush1.msra.mxu0 0.0
    %336 = vmatprep.subr.mxu0 0.0
    %337 = vmatpush1.msra.mxu0 0.0
    %338 = vmatprep.subr.mxu0 0.0
    %339 = vmatpush1.msra.mxu0 0.0
    %340 = vmatprep.subr.mxu0 0.0
    %341 = vmatpush1.msra.mxu0 0.0
    %342 = vmatprep.subr.mxu0 0.0
    %343 = vmatpush1.msra.mxu0 0.0
    %344 = vmatprep.subr.mxu0 0.0
    %345 = vmatpush1.msra.mxu0 0.0
    %346 = vmatprep.subr.mxu0 0.0
    %347 = vmatpush1.msra.mxu0 0.0
    %348 = vmatprep.mubr.f32.mxu0 0.0
    %349 = vmatmul.mubr.f32.gmra.mrb[0].mxu0 %v282
    %v350 = vpop.f32.mrb[0].mxu0
    %v351 = vadd.f32 %v270, %v350
    %v352 = vpop.f32.mrb[0].mxu0
    %353 = vdwg.mxu0
    %v354 = vxor.u32 %v351, 2147483648
    %v355 = vmul.f32 %v354, 1.442695
    %v356 = vpow.pop %v355
    %v357 = vadd.f32 %v356, 1.0
    %v358 = vrcp.pop %v357
    %v359 = vmul.f32 1.0, %v358
    %v360 = vmul.f32 %v359, 0.0
    %362 = vrot.lane.b32.xlu0 %v360, 96
    %v363 = vpop.permute.xlu0 %362
    %365 = vrot.lane.b32.xlu0 %v270, 64
    %v366 = vpop.permute.xlu0 %365
    %v368 = vsel %vm199, %v363, 0
    %370 = vmatprep.subr.mxu0 0.0
    %371 = vmatpush1.msra.mxu0 %v277
    %372 = vmatprep.subr.mxu0 0.0
    %373 = vmatpush1.msra.mxu0 %v278
    %374 = vmatprep.subr.mxu0 0.0
    %375 = vmatpush1.msra.mxu0 %v279
    %376 = vmatprep.subr.mxu0 0.0
    %377 = vmatpush1.msra.mxu0 %v280
    %378 = vmatprep.subr.mxu0 0.0
    %379 = vmatpush1.msra.mxu0 0.0
    %380 = vmatprep.subr.mxu0 0.0
    %381 = vmatpush1.msra.mxu0 0.0
    %382 = vmatprep.subr.mxu0 0.0
    %383 = vmatpush1.msra.mxu0 0.0
    %384 = vmatprep.subr.mxu0 0.0
    %385 = vmatpush1.msra.mxu0 0.0
    %386 = vmatprep.subr.mxu0 0.0
    %387 = vmatpush1.msra.mxu0 0.0
    %388 = vmatprep.subr.mxu0 0.0
    %389 = vmatpush1.msra.mxu0 0.0
    %390 = vmatprep.subr.mxu0 0.0
    %391 = vmatpush1.msra.mxu0 0.0
    %392 = vmatprep.subr.mxu0 0.0
    %393 = vmatpush1.msra.mxu0 0.0
    %394 = vmatprep.subr.mxu0 0.0
    %395 = vmatpush1.msra.mxu0 0.0
    %396 = vmatprep.subr.mxu0 0.0
    %397 = vmatpush1.msra.mxu0 0.0
    %398 = vmatprep.subr.mxu0 0.0
    %399 = vmatpush1.msra.mxu0 0.0
    %400 = vmatprep.subr.mxu0 0.0
    %401 = vmatpush1.msra.mxu0 0.0
    %402 = vmatprep.subr.mxu0 0.0
    %403 = vmatpush1.msra.mxu0 0.0
    %404 = vmatprep.subr.mxu0 0.0
    %405 = vmatpush1.msra.mxu0 0.0
    %406 = vmatprep.subr.mxu0 0.0
    %407 = vmatpush1.msra.mxu0 0.0
    %408 = vmatprep.subr.mxu0 0.0
    %409 = vmatpush1.msra.mxu0 0.0
    %410 = vmatprep.subr.mxu0 0.0
    %411 = vmatpush1.msra.mxu0 0.0
    %412 = vmatprep.subr.mxu0 0.0
    %413 = vmatpush1.msra.mxu0 0.0
    %414 = vmatprep.subr.mxu0 0.0
    %415 = vmatpush1.msra.mxu0 0.0
    %416 = vmatprep.subr.mxu0 0.0
    %417 = vmatpush1.msra.mxu0 0.0
    %418 = vmatprep.subr.mxu0 0.0
    %419 = vmatpush1.msra.mxu0 0.0
    %420 = vmatprep.subr.mxu0 0.0
    %421 = vmatpush1.msra.mxu0 0.0
    %422 = vmatprep.subr.mxu0 0.0
    %423 = vmatpush1.msra.mxu0 0.0
    %424 = vmatprep.subr.mxu0 0.0
    %425 = vmatpush1.msra.mxu0 0.0
    %426 = vmatprep.subr.mxu0 0.0
    %427 = vmatpush1.msra.mxu0 0.0
    %428 = vmatprep.subr.mxu0 0.0
    %429 = vmatpush1.msra.mxu0 0.0
    %430 = vmatprep.subr.mxu0 0.0
    %431 = vmatpush1.msra.mxu0 0.0
    %432 = vmatprep.subr.mxu0 0.0
    %433 = vmatpush1.msra.mxu0 0.0
    %434 = vmatprep.mubr.f32.mxu0 0.0
    %435 = vmatmul.mubr.f32.gmra.mrb[0].mxu0 %v368
    %v436 = vpop.f32.mrb[0].mxu0
    %v437 = vadd.f32 %v366, %v436
    %v438 = vpop.f32.mrb[0].mxu0
    %439 = vdwg.mxu0
    %v440 = vtanh.pop %v437
    %v441 = vsub.f32 1.0, %v359
    %v442 = vmul.f32 %v441, 0.0
    %v443 = vmul.f32 %v359, %v440
    %v444 = vadd.f32 %v442, %v443
    %v445 = vrot.slane %v270, 1
    %v448 = vsel %vm199, %v444, 0
    %450 = vmatprep.subr.mxu0 0.0
    %451 = vmatpush1.msra.mxu0 %v273
    %452 = vmatprep.subr.mxu0 0.0
    %453 = vmatpush1.msra.mxu0 %v274
    %454 = vmatprep.subr.mxu0 0.0
    %455 = vmatpush1.msra.mxu0 %v275
    %456 = vmatprep.subr.mxu0 0.0
    %457 = vmatpush1.msra.mxu0 %v276
    %458 = vmatprep.subr.mxu0 0.0
    %459 = vmatpush1.msra.mxu0 0.0
    %460 = vmatprep.subr.mxu0 0.0
    %461 = vmatpush1.msra.mxu0 0.0
    %462 = vmatprep.subr.mxu0 0.0
    %463 = vmatpush1.msra.mxu0 0.0
    %464 = vmatprep.subr.mxu0 0.0
    %465 = vmatpush1.msra.mxu0 0.0
    %466 = vmatprep.subr.mxu0 0.0
    %467 = vmatpush1.msra.mxu0 0.0
    %468 = vmatprep.subr.mxu0 0.0
    %469 = vmatpush1.msra.mxu0 0.0
    %470 = vmatprep.subr.mxu0 0.0
    %471 = vmatpush1.msra.mxu0 0.0
    %472 = vmatprep.subr.mxu0 0.0
    %473 = vmatpush1.msra.mxu0 0.0
    %474 = vmatprep.subr.mxu0 0.0
    %475 = vmatpush1.msra.mxu0 0.0
    %476 = vmatprep.subr.mxu0 0.0
    %477 = vmatpush1.msra.mxu0 0.0
    %478 = vmatprep.subr.mxu0 0.0
    %479 = vmatpush1.msra.mxu0 0.0
    %480 = vmatprep.subr.mxu0 0.0
    %481 = vmatpush1.msra.mxu0 0.0
    %482 = vmatprep.subr.mxu0 0.0
    %483 = vmatpush1.msra.mxu0 0.0
    %484 = vmatprep.subr.mxu0 0.0
    %485 = vmatpush1.msra.mxu0 0.0
    %486 = vmatprep.subr.mxu0 0.0
    %487 = vmatpush1.msra.mxu0 0.0
    %488 = vmatprep.subr.mxu0 0.0
    %489 = vmatpush1.msra.mxu0 0.0
    %490 = vmatprep.subr.mxu0 0.0
    %491 = vmatpush1.msra.mxu0 0.0
    %492 = vmatprep.subr.mxu0 0.0
    %493 = vmatpush1.msra.mxu0 0.0
    %494 = vmatprep.subr.mxu0 0.0
    %495 = vmatpush1.msra.mxu0 0.0
    %496 = vmatprep.subr.mxu0 0.0
    %497 = vmatpush1.msra.mxu0 0.0
    %498 = vmatprep.subr.mxu0 0.0
    %499 = vmatpush1.msra.mxu0 0.0
    %500 = vmatprep.subr.mxu0 0.0
    %501 = vmatpush1.msra.mxu0 0.0
    %502 = vmatprep.subr.mxu0 0.0
    %503 = vmatpush1.msra.mxu0 0.0
    %504 = vmatprep.subr.mxu0 0.0
    %505 = vmatpush1.msra.mxu0 0.0
    %506 = vmatprep.subr.mxu0 0.0
    %507 = vmatpush1.msra.mxu0 0.0
    %508 = vmatprep.subr.mxu0 0.0
    %509 = vmatpush1.msra.mxu0 0.0
    %510 = vmatprep.subr.mxu0 0.0
    %511 = vmatpush1.msra.mxu0 0.0
    %512 = vmatprep.subr.mxu0 0.0
    %513 = vmatpush1.msra.mxu0 0.0
    %514 = vmatprep.mubr.f32.mxu0 0.0
    %515 = vmatmul.mubr.f32.gmra.mrb[0].mxu0 %v448
    %v516 = vpop.f32.mrb[0].mxu0
    %v517 = vadd.f32 %v445, %v516
    %v518 = vpop.f32.mrb[0].mxu0
    %519 = vdwg.mxu0
    %v520 = vxor.u32 %v517, 2147483648
    %v521 = vmul.f32 %v520, 1.442695
    %v522 = vpow.pop %v521
    %v523 = vadd.f32 %v522, 1.0
    %v524 = vrcp.pop %v523
    %v525 = vmul.f32 1.0, %v524
    %526 = vrot.lane.b32.xlu0 %v444, 32
    %v527 = vpop.permute.xlu0 %526
    %v529 = vmul.f32 %v525, %v527
    %531 = vrot.lane.b32.xlu0 %v529, 96
    %v532 = vpop.permute.xlu0 %531
    %533 = vrot.lane.b32.xlu0 %v445, 64
    %v534 = vpop.permute.xlu0 %533
    %v536 = vsel %vm199, %v532, 0
    %538 = vmatprep.subr.mxu0 0.0
    %539 = vmatpush1.msra.mxu0 %v277
    %540 = vmatprep.subr.mxu0 0.0
    %541 = vmatpush1.msra.mxu0 %v278
    %542 = vmatprep.subr.mxu0 0.0
    %543 = vmatpush1.msra.mxu0 %v279
    %544 = vmatprep.subr.mxu0 0.0
    %545 = vmatpush1.msra.mxu0 %v280
    %546 = vmatprep.subr.mxu0 0.0
    %547 = vmatpush1.msra.mxu0 0.0
    %548 = vmatprep.subr.mxu0 0.0
    %549 = vmatpush1.msra.mxu0 0.0
    %550 = vmatprep.subr.mxu0 0.0
    %551 = vmatpush1.msra.mxu0 0.0
    %552 = vmatprep.subr.mxu0 0.0
    %553 = vmatpush1.msra.mxu0 0.0
    %554 = vmatprep.subr.mxu0 0.0
    %555 = vmatpush1.msra.mxu0 0.0
    %556 = vmatprep.subr.mxu0 0.0
    %557 = vmatpush1.msra.mxu0 0.0
    %558 = vmatprep.subr.mxu0 0.0
    %559 = vmatpush1.msra.mxu0 0.0
    %560 = vmatprep.subr.mxu0 0.0
    %561 = vmatpush1.msra.mxu0 0.0
    %562 = vmatprep.subr.mxu0 0.0
    %563 = vmatpush1.msra.mxu0 0.0
    %564 = vmatprep.subr.mxu0 0.0
    %565 = vmatpush1.msra.mxu0 0.0
    %566 = vmatprep.subr.mxu0 0.0
    %567 = vmatpush1.msra.mxu0 0.0
    %568 = vmatprep.subr.mxu0 0.0
    %569 = vmatpush1.msra.mxu0 0.0
    %570 = vmatprep.subr.mxu0 0.0
    %571 = vmatpush1.msra.mxu0 0.0
    %572 = vmatprep.subr.mxu0 0.0
    %573 = vmatpush1.msra.mxu0 0.0
    %574 = vmatprep.subr.mxu0 0.0
    %575 = vmatpush1.msra.mxu0 0.0
    %576 = vmatprep.subr.mxu0 0.0
    %577 = vmatpush1.msra.mxu0 0.0
    %578 = vmatprep.subr.mxu0 0.0
    %579 = vmatpush1.msra.mxu0 0.0
    %580 = vmatprep.subr.mxu0 0.0
    %581 = vmatpush1.msra.mxu0 0.0
    %582 = vmatprep.subr.mxu0 0.0
    %583 = vmatpush1.msra.mxu0 0.0
    %584 = vmatprep.subr.mxu0 0.0
    %585 = vmatpush1.msra.mxu0 0.0
    %586 = vmatprep.subr.mxu0 0.0
    %587 = vmatpush1.msra.mxu0 0.0
    %588 = vmatprep.subr.mxu0 0.0
    %589 = vmatpush1.msra.mxu0 0.0
    %590 = vmatprep.subr.mxu0 0.0
    %591 = vmatpush1.msra.mxu0 0.0
    %592 = vmatprep.subr.mxu0 0.0
    %593 = vmatpush1.msra.mxu0 0.0
    %594 = vmatprep.subr.mxu0 0.0
    %595 = vmatpush1.msra.mxu0 0.0
    %596 = vmatprep.subr.mxu0 0.0
    %597 = vmatpush1.msra.mxu0 0.0
    %598 = vmatprep.subr.mxu0 0.0
    %599 = vmatpush1.msra.mxu0 0.0
    %600 = vmatprep.subr.mxu0 0.0
    %601 = vmatpush1.msra.mxu0 0.0
    %602 = vmatprep.mubr.f32.mxu0 0.0
    %603 = vmatmul.mubr.f32.gmra.mrb[0].mxu0 %v536
    %v604 = vpop.f32.mrb[0].mxu0
    %v605 = vadd.f32 %v534, %v604
    %v606 = vpop.f32.mrb[0].mxu0
    %607 = vdwg.mxu0
    %v608 = vtanh.pop %v605
    %v609 = vsub.f32 1.0, %v525
    %v610 = vmul.f32 %v609, %v444
    %v611 = vmul.f32 %v525, %v608
    %v612 = vadd.f32 %v610, %v611
    %v613 = vrot.slane %v270, 2
    %v616 = vsel %vm199, %v612, 0
    %618 = vmatprep.subr.mxu0 0.0
    %619 = vmatpush1.msra.mxu0 %v273
    %620 = vmatprep.subr.mxu0 0.0
    %621 = vmatpush1.msra.mxu0 %v274
    %622 = vmatprep.subr.mxu0 0.0
    %623 = vmatpush1.msra.mxu0 %v275
    %624 = vmatprep.subr.mxu0 0.0
    %625 = vmatpush1.msra.mxu0 %v276
    %626 = vmatprep.subr.mxu0 0.0
    %627 = vmatpush1.msra.mxu0 0.0
    %628 = vmatprep.subr.mxu0 0.0
    %629 = vmatpush1.msra.mxu0 0.0
    %630 = vmatprep.subr.mxu0 0.0
    %631 = vmatpush1.msra.mxu0 0.0
    %632 = vmatprep.subr.mxu0 0.0
    %633 = vmatpush1.msra.mxu0 0.0
    %634 = vmatprep.subr.mxu0 0.0
    %635 = vmatpush1.msra.mxu0 0.0
    %636 = vmatprep.subr.mxu0 0.0
    %637 = vmatpush1.msra.mxu0 0.0
    %638 = vmatprep.subr.mxu0 0.0
    %639 = vmatpush1.msra.mxu0 0.0
    %640 = vmatprep.subr.mxu0 0.0
    %641 = vmatpush1.msra.mxu0 0.0
    %642 = vmatprep.subr.mxu0 0.0
    %643 = vmatpush1.msra.mxu0 0.0
    %644 = vmatprep.subr.mxu0 0.0
    %645 = vmatpush1.msra.mxu0 0.0
    %646 = vmatprep.subr.mxu0 0.0
    %647 = vmatpush1.msra.mxu0 0.0
    %648 = vmatprep.subr.mxu0 0.0
    %649 = vmatpush1.msra.mxu0 0.0
    %650 = vmatprep.subr.mxu0 0.0
    %651 = vmatpush1.msra.mxu0 0.0
    %652 = vmatprep.subr.mxu0 0.0
    %653 = vmatpush1.msra.mxu0 0.0
    %654 = vmatprep.subr.mxu0 0.0
    %655 = vmatpush1.msra.mxu0 0.0
    %656 = vmatprep.subr.mxu0 0.0
    %657 = vmatpush1.msra.mxu0 0.0
    %658 = vmatprep.subr.mxu0 0.0
    %659 = vmatpush1.msra.mxu0 0.0
    %660 = vmatprep.subr.mxu0 0.0
    %661 = vmatpush1.msra.mxu0 0.0
    %662 = vmatprep.subr.mxu0 0.0
    %663 = vmatpush1.msra.mxu0 0.0
    %664 = vmatprep.subr.mxu0 0.0
    %665 = vmatpush1.msra.mxu0 0.0
    %666 = vmatprep.subr.mxu0 0.0
    %667 = vmatpush1.msra.mxu0 0.0
    %668 = vmatprep.subr.mxu0 0.0
    %669 = vmatpush1.msra.mxu0 0.0
    %670 = vmatprep.subr.mxu0 0.0
    %671 = vmatpush1.msra.mxu0 0.0
    %672 = vmatprep.subr.mxu0 0.0
    %673 = vmatpush1.msra.mxu0 0.0
    %674 = vmatprep.subr.mxu0 0.0
    %675 = vmatpush1.msra.mxu0 0.0
    %676 = vmatprep.subr.mxu0 0.0
    %677 = vmatpush1.msra.mxu0 0.0
    %678 = vmatprep.subr.mxu0 0.0
    %679 = vmatpush1.msra.mxu0 0.0
    %680 = vmatprep.subr.mxu0 0.0
    %681 = vmatpush1.msra.mxu0 0.0
    %682 = vmatprep.mubr.f32.mxu0 0.0
    %683 = vmatmul.mubr.f32.gmra.mrb[0].mxu0 %v616
    %v684 = vpop.f32.mrb[0].mxu0
    %v685 = vadd.f32 %v613, %v684
    %v686 = vpop.f32.mrb[0].mxu0
    %687 = vdwg.mxu0
    %v688 = vxor.u32 %v685, 2147483648
    %v689 = vmul.f32 %v688, 1.442695
    %v690 = vpow.pop %v689
    %v691 = vadd.f32 %v690, 1.0
    %v692 = vrcp.pop %v691
    %v693 = vmul.f32 1.0, %v692
    %694 = vrot.lane.b32.xlu0 %v612, 32
    %v695 = vpop.permute.xlu0 %694
    %v697 = vmul.f32 %v693, %v695
    %699 = vrot.lane.b32.xlu0 %v697, 96
    %v700 = vpop.permute.xlu0 %699
    %701 = vrot.lane.b32.xlu0 %v613, 64
    %v702 = vpop.permute.xlu0 %701
    %v704 = vsel %vm199, %v700, 0
    %706 = vmatprep.subr.mxu0 0.0
    %707 = vmatpush1.msra.mxu0 %v277
    %708 = vmatprep.subr.mxu0 0.0
    %709 = vmatpush1.msra.mxu0 %v278
    %710 = vmatprep.subr.mxu0 0.0
    %711 = vmatpush1.msra.mxu0 %v279
    %712 = vmatprep.subr.mxu0 0.0
    %713 = vmatpush1.msra.mxu0 %v280
    %714 = vmatprep.subr.mxu0 0.0
    %715 = vmatpush1.msra.mxu0 0.0
    %716 = vmatprep.subr.mxu0 0.0
    %717 = vmatpush1.msra.mxu0 0.0
    %718 = vmatprep.subr.mxu0 0.0
    %719 = vmatpush1.msra.mxu0 0.0
    %720 = vmatprep.subr.mxu0 0.0
    %721 = vmatpush1.msra.mxu0 0.0
    %722 = vmatprep.subr.mxu0 0.0
    %723 = vmatpush1.msra.mxu0 0.0
    %724 = vmatprep.subr.mxu0 0.0
    %725 = vmatpush1.msra.mxu0 0.0
    %726 = vmatprep.subr.mxu0 0.0
    %727 = vmatpush1.msra.mxu0 0.0
    %728 = vmatprep.subr.mxu0 0.0
    %729 = vmatpush1.msra.mxu0 0.0
    %730 = vmatprep.subr.mxu0 0.0
    %731 = vmatpush1.msra.mxu0 0.0
    %732 = vmatprep.subr.mxu0 0.0
    %733 = vmatpush1.msra.mxu0 0.0
    %734 = vmatprep.subr.mxu0 0.0
    %735 = vmatpush1.msra.mxu0 0.0
    %736 = vmatprep.subr.mxu0 0.0
    %737 = vmatpush1.msra.mxu0 0.0
    %738 = vmatprep.subr.mxu0 0.0
    %739 = vmatpush1.msra.mxu0 0.0
    %740 = vmatprep.subr.mxu0 0.0
    %741 = vmatpush1.msra.mxu0 0.0
    %742 = vmatprep.subr.mxu0 0.0
    %743 = vmatpush1.msra.mxu0 0.0
    %744 = vmatprep.subr.mxu0 0.0
    %745 = vmatpush1.msra.mxu0 0.0
    %746 = vmatprep.subr.mxu0 0.0
    %747 = vmatpush1.msra.mxu0 0.0
    %748 = vmatprep.subr.mxu0 0.0
    %749 = vmatpush1.msra.mxu0 0.0
    %750 = vmatprep.subr.mxu0 0.0
    %751 = vmatpush1.msra.mxu0 0.0
    %752 = vmatprep.subr.mxu0 0.0
    %753 = vmatpush1.msra.mxu0 0.0
    %754 = vmatprep.subr.mxu0 0.0
    %755 = vmatpush1.msra.mxu0 0.0
    %756 = vmatprep.subr.mxu0 0.0
    %757 = vmatpush1.msra.mxu0 0.0
    %758 = vmatprep.subr.mxu0 0.0
    %759 = vmatpush1.msra.mxu0 0.0
    %760 = vmatprep.subr.mxu0 0.0
    %761 = vmatpush1.msra.mxu0 0.0
    %762 = vmatprep.subr.mxu0 0.0
    %763 = vmatpush1.msra.mxu0 0.0
    %764 = vmatprep.subr.mxu0 0.0
    %765 = vmatpush1.msra.mxu0 0.0
    %766 = vmatprep.subr.mxu0 0.0
    %767 = vmatpush1.msra.mxu0 0.0
    %768 = vmatprep.subr.mxu0 0.0
    %769 = vmatpush1.msra.mxu0 0.0
    %770 = vmatprep.mubr.f32.mxu0 0.0
    %771 = vmatmul.mubr.f32.gmra.mrb[0].mxu0 %v704
    %v772 = vpop.f32.mrb[0].mxu0
    %v773 = vadd.f32 %v702, %v772
    %v774 = vpop.f32.mrb[0].mxu0
    %775 = vdwg.mxu0
    %v776 = vtanh.pop %v773
    %v777 = vsub.f32 1.0, %v693
    %v778 = vmul.f32 %v777, %v612
    %v779 = vmul.f32 %v693, %v776
    %v780 = vadd.f32 %v778, %v779
    %v781 = vrot.slane %v270, 3
    %v784 = vsel %vm199, %v780, 0
    %786 = vmatprep.subr.mxu0 0.0
    %787 = vmatpush1.msra.mxu0 %v273
    %788 = vmatprep.subr.mxu0 0.0
    %789 = vmatpush1.msra.mxu0 %v274
    %790 = vmatprep.subr.mxu0 0.0
    %791 = vmatpush1.msra.mxu0 %v275
    %792 = vmatprep.subr.mxu0 0.0
    %793 = vmatpush1.msra.mxu0 %v276
    %794 = vmatprep.subr.mxu0 0.0
    %795 = vmatpush1.msra.mxu0 0.0
    %796 = vmatprep.subr.mxu0 0.0
    %797 = vmatpush1.msra.mxu0 0.0
    %798 = vmatprep.subr.mxu0 0.0
    %799 = vmatpush1.msra.mxu0 0.0
    %800 = vmatprep.subr.mxu0 0.0
    %801 = vmatpush1.msra.mxu0 0.0
    %802 = vmatprep.subr.mxu0 0.0
    %803 = vmatpush1.msra.mxu0 0.0
    %804 = vmatprep.subr.mxu0 0.0
    %805 = vmatpush1.msra.mxu0 0.0
    %806 = vmatprep.subr.mxu0 0.0
    %807 = vmatpush1.msra.mxu0 0.0
    %808 = vmatprep.subr.mxu0 0.0
    %809 = vmatpush1.msra.mxu0 0.0
    %810 = vmatprep.subr.mxu0 0.0
    %811 = vmatpush1.msra.mxu0 0.0
    %812 = vmatprep.subr.mxu0 0.0
    %813 = vmatpush1.msra.mxu0 0.0
    %814 = vmatprep.subr.mxu0 0.0
    %815 = vmatpush1.msra.mxu0 0.0
    %816 = vmatprep.subr.mxu0 0.0
    %817 = vmatpush1.msra.mxu0 0.0
    %818 = vmatprep.subr.mxu0 0.0
    %819 = vmatpush1.msra.mxu0 0.0
    %820 = vmatprep.subr.mxu0 0.0
    %821 = vmatpush1.msra.mxu0 0.0
    %822 = vmatprep.subr.mxu0 0.0
    %823 = vmatpush1.msra.mxu0 0.0
    %824 = vmatprep.subr.mxu0 0.0
    %825 = vmatpush1.msra.mxu0 0.0
    %826 = vmatprep.subr.mxu0 0.0
    %827 = vmatpush1.msra.mxu0 0.0
    %828 = vmatprep.subr.mxu0 0.0
    %829 = vmatpush1.msra.mxu0 0.0
    %830 = vmatprep.subr.mxu0 0.0
    %831 = vmatpush1.msra.mxu0 0.0
    %832 = vmatprep.subr.mxu0 0.0
    %833 = vmatpush1.msra.mxu0 0.0
    %834 = vmatprep.subr.mxu0 0.0
    %835 = vmatpush1.msra.mxu0 0.0
    %836 = vmatprep.subr.mxu0 0.0
    %837 = vmatpush1.msra.mxu0 0.0
    %838 = vmatprep.subr.mxu0 0.0
    %839 = vmatpush1.msra.mxu0 0.0
    %840 = vmatprep.subr.mxu0 0.0
    %841 = vmatpush1.msra.mxu0 0.0
    %842 = vmatprep.subr.mxu0 0.0
    %843 = vmatpush1.msra.mxu0 0.0
    %844 = vmatprep.subr.mxu0 0.0
    %845 = vmatpush1.msra.mxu0 0.0
    %846 = vmatprep.subr.mxu0 0.0
    %847 = vmatpush1.msra.mxu0 0.0
    %848 = vmatprep.subr.mxu0 0.0
    %849 = vmatpush1.msra.mxu0 0.0
    %850 = vmatprep.mubr.f32.mxu0 0.0
    %851 = vmatmul.mubr.f32.gmra.mrb[0].mxu0 %v784
    %v852 = vpop.f32.mrb[0].mxu0
    %v853 = vadd.f32 %v781, %v852
    %v854 = vpop.f32.mrb[0].mxu0
    %855 = vdwg.mxu0
    %v856 = vxor.u32 %v853, 2147483648
    %v857 = vmul.f32 %v856, 1.442695
    %v858 = vpow.pop %v857
    %v859 = vadd.f32 %v858, 1.0
    %v860 = vrcp.pop %v859
    %v861 = vmul.f32 1.0, %v860
    %862 = vrot.lane.b32.xlu0 %v780, 32
    %v863 = vpop.permute.xlu0 %862
    %v865 = vmul.f32 %v861, %v863
    %867 = vrot.lane.b32.xlu0 %v865, 96
    %v868 = vpop.permute.xlu0 %867
    %869 = vrot.lane.b32.xlu0 %v781, 64
    %v870 = vpop.permute.xlu0 %869
    %v872 = vsel %vm199, %v868, 0
    %874 = vmatprep.subr.mxu0 0.0
    %875 = vmatpush1.msra.mxu0 %v277
    %876 = vmatprep.subr.mxu0 0.0
    %877 = vmatpush1.msra.mxu0 %v278
    %878 = vmatprep.subr.mxu0 0.0
    %879 = vmatpush1.msra.mxu0 %v279
    %880 = vmatprep.subr.mxu0 0.0
    %881 = vmatpush1.msra.mxu0 %v280
    %882 = vmatprep.subr.mxu0 0.0
    %883 = vmatpush1.msra.mxu0 0.0
    %884 = vmatprep.subr.mxu0 0.0
    %885 = vmatpush1.msra.mxu0 0.0
    %886 = vmatprep.subr.mxu0 0.0
    %887 = vmatpush1.msra.mxu0 0.0
    %888 = vmatprep.subr.mxu0 0.0
    %889 = vmatpush1.msra.mxu0 0.0
    %890 = vmatprep.subr.mxu0 0.0
    %891 = vmatpush1.msra.mxu0 0.0
    %892 = vmatprep.subr.mxu0 0.0
    %893 = vmatpush1.msra.mxu0 0.0
    %894 = vmatprep.subr.mxu0 0.0
    %895 = vmatpush1.msra.mxu0 0.0
    %896 = vmatprep.subr.mxu0 0.0
    %897 = vmatpush1.msra.mxu0 0.0
    %898 = vmatprep.subr.mxu0 0.0
    %899 = vmatpush1.msra.mxu0 0.0
    %900 = vmatprep.subr.mxu0 0.0
    %901 = vmatpush1.msra.mxu0 0.0
    %902 = vmatprep.subr.mxu0 0.0
    %903 = vmatpush1.msra.mxu0 0.0
    %904 = vmatprep.subr.mxu0 0.0
    %905 = vmatpush1.msra.mxu0 0.0
    %906 = vmatprep.subr.mxu0 0.0
    %907 = vmatpush1.msra.mxu0 0.0
    %908 = vmatprep.subr.mxu0 0.0
    %909 = vmatpush1.msra.mxu0 0.0
    %910 = vmatprep.subr.mxu0 0.0
    %911 = vmatpush1.msra.mxu0 0.0
    %912 = vmatprep.subr.mxu0 0.0
    %913 = vmatpush1.msra.mxu0 0.0
    %914 = vmatprep.subr.mxu0 0.0
    %915 = vmatpush1.msra.mxu0 0.0
    %916 = vmatprep.subr.mxu0 0.0
    %917 = vmatpush1.msra.mxu0 0.0
    %918 = vmatprep.subr.mxu0 0.0
    %919 = vmatpush1.msra.mxu0 0.0
    %920 = vmatprep.subr.mxu0 0.0
    %921 = vmatpush1.msra.mxu0 0.0
    %922 = vmatprep.subr.mxu0 0.0
    %923 = vmatpush1.msra.mxu0 0.0
    %924 = vmatprep.subr.mxu0 0.0
    %925 = vmatpush1.msra.mxu0 0.0
    %926 = vmatprep.subr.mxu0 0.0
    %927 = vmatpush1.msra.mxu0 0.0
    %928 = vmatprep.subr.mxu0 0.0
    %929 = vmatpush1.msra.mxu0 0.0
    %930 = vmatprep.subr.mxu0 0.0
    %931 = vmatpush1.msra.mxu0 0.0
    %932 = vmatprep.subr.mxu0 0.0
    %933 = vmatpush1.msra.mxu0 0.0
    %934 = vmatprep.subr.mxu0 0.0
    %935 = vmatpush1.msra.mxu0 0.0
    %936 = vmatprep.subr.mxu0 0.0
    %937 = vmatpush1.msra.mxu0 0.0
    %938 = vmatprep.mubr.f32.mxu0 0.0
    %939 = vmatmul.mubr.f32.gmra.mrb[0].mxu0 %v872
    %v940 = vpop.f32.mrb[0].mxu0
    %v941 = vadd.f32 %v870, %v940
    %v942 = vpop.f32.mrb[0].mxu0
    %943 = vdwg.mxu0
    %v944 = vtanh.pop %v941
    %v945 = vsub.f32 1.0, %v861
    %v946 = vmul.f32 %v945, %v780
    %v947 = vmul.f32 %v861, %v944
    %v948 = vadd.f32 %v946, %v947
    %v949 = vrot.slane %v270, 4
    %v952 = vsel %vm199, %v948, 0
    %954 = vmatprep.subr.mxu0 0.0
    %955 = vmatpush1.msra.mxu0 %v273
    %956 = vmatprep.subr.mxu0 0.0
    %957 = vmatpush1.msra.mxu0 %v274
    %958 = vmatprep.subr.mxu0 0.0
    %959 = vmatpush1.msra.mxu0 %v275
    %960 = vmatprep.subr.mxu0 0.0
    %961 = vmatpush1.msra.mxu0 %v276
    %962 = vmatprep.subr.mxu0 0.0
    %963 = vmatpush1.msra.mxu0 0.0
    %964 = vmatprep.subr.mxu0 0.0
    %965 = vmatpush1.msra.mxu0 0.0
    %966 = vmatprep.subr.mxu0 0.0
    %967 = vmatpush1.msra.mxu0 0.0
    %968 = vmatprep.subr.mxu0 0.0
    %969 = vmatpush1.msra.mxu0 0.0
    %970 = vmatprep.subr.mxu0 0.0
    %971 = vmatpush1.msra.mxu0 0.0
    %972 = vmatprep.subr.mxu0 0.0
    %973 = vmatpush1.msra.mxu0 0.0
    %974 = vmatprep.subr.mxu0 0.0
    %975 = vmatpush1.msra.mxu0 0.0
    %976 = vmatprep.subr.mxu0 0.0
    %977 = vmatpush1.msra.mxu0 0.0
    %978 = vmatprep.subr.mxu0 0.0
    %979 = vmatpush1.msra.mxu0 0.0
    %980 = vmatprep.subr.mxu0 0.0
    %981 = vmatpush1.msra.mxu0 0.0
    %982 = vmatprep.subr.mxu0 0.0
    %983 = vmatpush1.msra.mxu0 0.0
    %984 = vmatprep.subr.mxu0 0.0
    %985 = vmatpush1.msra.mxu0 0.0
    %986 = vmatprep.subr.mxu0 0.0
    %987 = vmatpush1.msra.mxu0 0.0
    %988 = vmatprep.subr.mxu0 0.0
    %989 = vmatpush1.msra.mxu0 0.0
    %990 = vmatprep.subr.mxu0 0.0
    %991 = vmatpush1.msra.mxu0 0.0
    %992 = vmatprep.subr.mxu0 0.0
    %993 = vmatpush1.msra.mxu0 0.0
    %994 = vmatprep.subr.mxu0 0.0
    %995 = vmatpush1.msra.mxu0 0.0
    %996 = vmatprep.subr.mxu0 0.0
    %997 = vmatpush1.msra.mxu0 0.0
    %998 = vmatprep.subr.mxu0 0.0
    %999 = vmatpush1.msra.mxu0 0.0
    %1000 = vmatprep.subr.mxu0 0.0
    %1001 = vmatpush1.msra.mxu0 0.0
    %1002 = vmatprep.subr.mxu0 0.0
    %1003 = vmatpush1.msra.mxu0 0.0
    %1004 = vmatprep.subr.mxu0 0.0
    %1005 = vmatpush1.msra.mxu0 0.0
    %1006 = vmatprep.subr.mxu0 0.0
    %1007 = vmatpush1.msra.mxu0 0.0
    %1008 = vmatprep.subr.mxu0 0.0
    %1009 = vmatpush1.msra.mxu0 0.0
    %1010 = vmatprep.subr.mxu0 0.0
    %1011 = vmatpush1.msra.mxu0 0.0
    %1012 = vmatprep.subr.mxu0 0.0
    %1013 = vmatpush1.msra.mxu0 0.0
    %1014 = vmatprep.subr.mxu0 0.0
    %1015 = vmatpush1.msra.mxu0 0.0
    %1016 = vmatprep.subr.mxu0 0.0
    %1017 = vmatpush1.msra.mxu0 0.0
    %1018 = vmatprep.mubr.f32.mxu0 0.0
    %1019 = vmatmul.mubr.f32.gmra.mrb[0].mxu0 %v952
    %v1020 = vpop.f32.mrb[0].mxu0
    %v1021 = vadd.f32 %v949, %v1020
    %v1022 = vpop.f32.mrb[0].mxu0
    %1023 = vdwg.mxu0
    %v1024 = vxor.u32 %v1021, 2147483648
    %v1025 = vmul.f32 %v1024, 1.442695
    %v1026 = vpow.pop %v1025
    %v1027 = vadd.f32 %v1026, 1.0
    %v1028 = vrcp.pop %v1027
    %v1029 = vmul.f32 1.0, %v1028
    %1030 = vrot.lane.b32.xlu0 %v948, 32
    %v1031 = vpop.permute.xlu0 %1030
    %v1033 = vmul.f32 %v1029, %v1031
    %1035 = vrot.lane.b32.xlu0 %v1033, 96
    %v1036 = vpop.permute.xlu0 %1035
    %1037 = vrot.lane.b32.xlu0 %v949, 64
    %v1038 = vpop.permute.xlu0 %1037
    %v1040 = vsel %vm199, %v1036, 0
    %1042 = vmatprep.subr.mxu0 0.0
    %1043 = vmatpush1.msra.mxu0 %v277
    %1044 = vmatprep.subr.mxu0 0.0
    %1045 = vmatpush1.msra.mxu0 %v278
    %1046 = vmatprep.subr.mxu0 0.0
    %1047 = vmatpush1.msra.mxu0 %v279
    %1048 = vmatprep.subr.mxu0 0.0
    %1049 = vmatpush1.msra.mxu0 %v280
    %1050 = vmatprep.subr.mxu0 0.0
    %1051 = vmatpush1.msra.mxu0 0.0
    %1052 = vmatprep.subr.mxu0 0.0
    %1053 = vmatpush1.msra.mxu0 0.0
    %1054 = vmatprep.subr.mxu0 0.0
    %1055 = vmatpush1.msra.mxu0 0.0
    %1056 = vmatprep.subr.mxu0 0.0
    %1057 = vmatpush1.msra.mxu0 0.0
    %1058 = vmatprep.subr.mxu0 0.0
    %1059 = vmatpush1.msra.mxu0 0.0
    %1060 = vmatprep.subr.mxu0 0.0
    %1061 = vmatpush1.msra.mxu0 0.0
    %1062 = vmatprep.subr.mxu0 0.0
    %1063 = vmatpush1.msra.mxu0 0.0
    %1064 = vmatprep.subr.mxu0 0.0
    %1065 = vmatpush1.msra.mxu0 0.0
    %1066 = vmatprep.subr.mxu0 0.0
    %1067 = vmatpush1.msra.mxu0 0.0
    %1068 = vmatprep.subr.mxu0 0.0
    %1069 = vmatpush1.msra.mxu0 0.0
    %1070 = vmatprep.subr.mxu0 0.0
    %1071 = vmatpush1.msra.mxu0 0.0
    %1072 = vmatprep.subr.mxu0 0.0
    %1073 = vmatpush1.msra.mxu0 0.0
    %1074 = vmatprep.subr.mxu0 0.0
    %1075 = vmatpush1.msra.mxu0 0.0
    %1076 = vmatprep.subr.mxu0 0.0
    %1077 = vmatpush1.msra.mxu0 0.0
    %1078 = vmatprep.subr.mxu0 0.0
    %1079 = vmatpush1.msra.mxu0 0.0
    %1080 = vmatprep.subr.mxu0 0.0
    %1081 = vmatpush1.msra.mxu0 0.0
    %1082 = vmatprep.subr.mxu0 0.0
    %1083 = vmatpush1.msra.mxu0 0.0
    %1084 = vmatprep.subr.mxu0 0.0
    %1085 = vmatpush1.msra.mxu0 0.0
    %1086 = vmatprep.subr.mxu0 0.0
    %1087 = vmatpush1.msra.mxu0 0.0
    %1088 = vmatprep.subr.mxu0 0.0
    %1089 = vmatpush1.msra.mxu0 0.0
    %1090 = vmatprep.subr.mxu0 0.0
    %1091 = vmatpush1.msra.mxu0 0.0
    %1092 = vmatprep.subr.mxu0 0.0
    %1093 = vmatpush1.msra.mxu0 0.0
    %1094 = vmatprep.subr.mxu0 0.0
    %1095 = vmatpush1.msra.mxu0 0.0
    %1096 = vmatprep.subr.mxu0 0.0
    %1097 = vmatpush1.msra.mxu0 0.0
    %1098 = vmatprep.subr.mxu0 0.0
    %1099 = vmatpush1.msra.mxu0 0.0
    %1100 = vmatprep.subr.mxu0 0.0
    %1101 = vmatpush1.msra.mxu0 0.0
    %1102 = vmatprep.subr.mxu0 0.0
    %1103 = vmatpush1.msra.mxu0 0.0
    %1104 = vmatprep.subr.mxu0 0.0
    %1105 = vmatpush1.msra.mxu0 0.0
    %1106 = vmatprep.mubr.f32.mxu0 0.0
    %1107 = vmatmul.mubr.f32.gmra.mrb[0].mxu0 %v1040
    %v1108 = vpop.f32.mrb[0].mxu0
    %v1109 = vadd.f32 %v1038, %v1108
    %v1110 = vpop.f32.mrb[0].mxu0
    %1111 = vdwg.mxu0
    %v1112 = vtanh.pop %v1109
    %v1113 = vsub.f32 1.0, %v1029
    %v1114 = vmul.f32 %v1113, %v948
    %v1115 = vmul.f32 %v1029, %v1112
    %v1116 = vadd.f32 %v1114, %v1115
    %v1117 = vrot.slane %v270, 5
    %v1120 = vsel %vm199, %v1116, 0
    %1122 = vmatprep.subr.mxu0 0.0
    %1123 = vmatpush1.msra.mxu0 %v273
    %1124 = vmatprep.subr.mxu0 0.0
    %1125 = vmatpush1.msra.mxu0 %v274
    %1126 = vmatprep.subr.mxu0 0.0
    %1127 = vmatpush1.msra.mxu0 %v275
    %1128 = vmatprep.subr.mxu0 0.0
    %1129 = vmatpush1.msra.mxu0 %v276
    %1130 = vmatprep.subr.mxu0 0.0
    %1131 = vmatpush1.msra.mxu0 0.0
    %1132 = vmatprep.subr.mxu0 0.0
    %1133 = vmatpush1.msra.mxu0 0.0
    %1134 = vmatprep.subr.mxu0 0.0
    %1135 = vmatpush1.msra.mxu0 0.0
    %1136 = vmatprep.subr.mxu0 0.0
    %1137 = vmatpush1.msra.mxu0 0.0
    %1138 = vmatprep.subr.mxu0 0.0
    %1139 = vmatpush1.msra.mxu0 0.0
    %1140 = vmatprep.subr.mxu0 0.0
    %1141 = vmatpush1.msra.mxu0 0.0
    %1142 = vmatprep.subr.mxu0 0.0
    %1143 = vmatpush1.msra.mxu0 0.0
    %1144 = vmatprep.subr.mxu0 0.0
    %1145 = vmatpush1.msra.mxu0 0.0
    %1146 = vmatprep.subr.mxu0 0.0
    %1147 = vmatpush1.msra.mxu0 0.0
    %1148 = vmatprep.subr.mxu0 0.0
    %1149 = vmatpush1.msra.mxu0 0.0
    %1150 = vmatprep.subr.mxu0 0.0
    %1151 = vmatpush1.msra.mxu0 0.0
    %1152 = vmatprep.subr.mxu0 0.0
    %1153 = vmatpush1.msra.mxu0 0.0
    %1154 = vmatprep.subr.mxu0 0.0
    %1155 = vmatpush1.msra.mxu0 0.0
    %1156 = vmatprep.subr.mxu0 0.0
    %1157 = vmatpush1.msra.mxu0 0.0
    %1158 = vmatprep.subr.mxu0 0.0
    %1159 = vmatpush1.msra.mxu0 0.0
    %1160 = vmatprep.subr.mxu0 0.0
    %1161 = vmatpush1.msra.mxu0 0.0
    %1162 = vmatprep.subr.mxu0 0.0
    %1163 = vmatpush1.msra.mxu0 0.0
    %1164 = vmatprep.subr.mxu0 0.0
    %1165 = vmatpush1.msra.mxu0 0.0
    %1166 = vmatprep.subr.mxu0 0.0
    %1167 = vmatpush1.msra.mxu0 0.0
    %1168 = vmatprep.subr.mxu0 0.0
    %1169 = vmatpush1.msra.mxu0 0.0
    %1170 = vmatprep.subr.mxu0 0.0
    %1171 = vmatpush1.msra.mxu0 0.0
    %1172 = vmatprep.subr.mxu0 0.0
    %1173 = vmatpush1.msra.mxu0 0.0
    %1174 = vmatprep.subr.mxu0 0.0
    %1175 = vmatpush1.msra.mxu0 0.0
    %1176 = vmatprep.subr.mxu0 0.0
    %1177 = vmatpush1.msra.mxu0 0.0
    %1178 = vmatprep.subr.mxu0 0.0
    %1179 = vmatpush1.msra.mxu0 0.0
    %1180 = vmatprep.subr.mxu0 0.0
    %1181 = vmatpush1.msra.mxu0 0.0
    %1182 = vmatprep.subr.mxu0 0.0
    %1183 = vmatpush1.msra.mxu0 0.0
    %1184 = vmatprep.subr.mxu0 0.0
    %1185 = vmatpush1.msra.mxu0 0.0
    %1186 = vmatprep.mubr.f32.mxu0 0.0
    %1187 = vmatmul.mubr.f32.gmra.mrb[0].mxu0 %v1120
    %v1188 = vpop.f32.mrb[0].mxu0
    %v1189 = vadd.f32 %v1117, %v1188
    %v1190 = vpop.f32.mrb[0].mxu0
    %1191 = vdwg.mxu0
    %v1192 = vxor.u32 %v1189, 2147483648
    %v1193 = vmul.f32 %v1192, 1.442695
    %v1194 = vpow.pop %v1193
    %v1195 = vadd.f32 %v1194, 1.0
    %v1196 = vrcp.pop %v1195
    %v1197 = vmul.f32 1.0, %v1196
    %1198 = vrot.lane.b32.xlu0 %v1116, 32
    %v1199 = vpop.permute.xlu0 %1198
    %v1201 = vmul.f32 %v1197, %v1199
    %1203 = vrot.lane.b32.xlu0 %v1201, 96
    %v1204 = vpop.permute.xlu0 %1203
    %1205 = vrot.lane.b32.xlu0 %v1117, 64
    %v1206 = vpop.permute.xlu0 %1205
    %v1208 = vsel %vm199, %v1204, 0
    %1210 = vmatprep.subr.mxu0 0.0
    %1211 = vmatpush1.msra.mxu0 %v277
    %1212 = vmatprep.subr.mxu0 0.0
    %1213 = vmatpush1.msra.mxu0 %v278
    %1214 = vmatprep.subr.mxu0 0.0
    %1215 = vmatpush1.msra.mxu0 %v279
    %1216 = vmatprep.subr.mxu0 0.0
    %1217 = vmatpush1.msra.mxu0 %v280
    %1218 = vmatprep.subr.mxu0 0.0
    %1219 = vmatpush1.msra.mxu0 0.0
    %1220 = vmatprep.subr.mxu0 0.0
    %1221 = vmatpush1.msra.mxu0 0.0
    %1222 = vmatprep.subr.mxu0 0.0
    %1223 = vmatpush1.msra.mxu0 0.0
    %1224 = vmatprep.subr.mxu0 0.0
    %1225 = vmatpush1.msra.mxu0 0.0
    %1226 = vmatprep.subr.mxu0 0.0
    %1227 = vmatpush1.msra.mxu0 0.0
    %1228 = vmatprep.subr.mxu0 0.0
    %1229 = vmatpush1.msra.mxu0 0.0
    %1230 = vmatprep.subr.mxu0 0.0
    %1231 = vmatpush1.msra.mxu0 0.0
    %1232 = vmatprep.subr.mxu0 0.0
    %1233 = vmatpush1.msra.mxu0 0.0
    %1234 = vmatprep.subr.mxu0 0.0
    %1235 = vmatpush1.msra.mxu0 0.0
    %1236 = vmatprep.subr.mxu0 0.0
    %1237 = vmatpush1.msra.mxu0 0.0
    %1238 = vmatprep.subr.mxu0 0.0
    %1239 = vmatpush1.msra.mxu0 0.0
    %1240 = vmatprep.subr.mxu0 0.0
    %1241 = vmatpush1.msra.mxu0 0.0
    %1242 = vmatprep.subr.mxu0 0.0
    %1243 = vmatpush1.msra.mxu0 0.0
    %1244 = vmatprep.subr.mxu0 0.0
    %1245 = vmatpush1.msra.mxu0 0.0
    %1246 = vmatprep.subr.mxu0 0.0
    %1247 = vmatpush1.msra.mxu0 0.0
    %1248 = vmatprep.subr.mxu0 0.0
    %1249 = vmatpush1.msra.mxu0 0.0
    %1250 = vmatprep.subr.mxu0 0.0
    %1251 = vmatpush1.msra.mxu0 0.0
    %1252 = vmatprep.subr.mxu0 0.0
    %1253 = vmatpush1.msra.mxu0 0.0
    %1254 = vmatprep.subr.mxu0 0.0
    %1255 = vmatpush1.msra.mxu0 0.0
    %1256 = vmatprep.subr.mxu0 0.0
    %1257 = vmatpush1.msra.mxu0 0.0
    %1258 = vmatprep.subr.mxu0 0.0
    %1259 = vmatpush1.msra.mxu0 0.0
    %1260 = vmatprep.subr.mxu0 0.0
    %1261 = vmatpush1.msra.mxu0 0.0
    %1262 = vmatprep.subr.mxu0 0.0
    %1263 = vmatpush1.msra.mxu0 0.0
    %1264 = vmatprep.subr.mxu0 0.0
    %1265 = vmatpush1.msra.mxu0 0.0
    %1266 = vmatprep.subr.mxu0 0.0
    %1267 = vmatpush1.msra.mxu0 0.0
    %1268 = vmatprep.subr.mxu0 0.0
    %1269 = vmatpush1.msra.mxu0 0.0
    %1270 = vmatprep.subr.mxu0 0.0
    %1271 = vmatpush1.msra.mxu0 0.0
    %1272 = vmatprep.subr.mxu0 0.0
    %1273 = vmatpush1.msra.mxu0 0.0
    %1274 = vmatprep.mubr.f32.mxu0 0.0
    %1275 = vmatmul.mubr.f32.gmra.mrb[0].mxu0 %v1208
    %v1276 = vpop.f32.mrb[0].mxu0
    %v1277 = vadd.f32 %v1206, %v1276
    %v1278 = vpop.f32.mrb[0].mxu0
    %1279 = vdwg.mxu0
    %v1280 = vtanh.pop %v1277
    %v1281 = vsub.f32 1.0, %v1197
    %v1282 = vmul.f32 %v1281, %v1116
    %v1283 = vmul.f32 %v1197, %v1280
    %v1284 = vadd.f32 %v1282, %v1283
    %v1285 = vrot.slane %v270, 6
    %v1288 = vsel %vm199, %v1284, 0
    %1290 = vmatprep.subr.mxu0 0.0
    %1291 = vmatpush1.msra.mxu0 %v273
    %1292 = vmatprep.subr.mxu0 0.0
    %1293 = vmatpush1.msra.mxu0 %v274
    %1294 = vmatprep.subr.mxu0 0.0
    %1295 = vmatpush1.msra.mxu0 %v275
    %1296 = vmatprep.subr.mxu0 0.0
    %1297 = vmatpush1.msra.mxu0 %v276
    %1298 = vmatprep.subr.mxu0 0.0
    %1299 = vmatpush1.msra.mxu0 0.0
    %1300 = vmatprep.subr.mxu0 0.0
    %1301 = vmatpush1.msra.mxu0 0.0
    %1302 = vmatprep.subr.mxu0 0.0
    %1303 = vmatpush1.msra.mxu0 0.0
    %1304 = vmatprep.subr.mxu0 0.0
    %1305 = vmatpush1.msra.mxu0 0.0
    %1306 = vmatprep.subr.mxu0 0.0
    %1307 = vmatpush1.msra.mxu0 0.0
    %1308 = vmatprep.subr.mxu0 0.0
    %1309 = vmatpush1.msra.mxu0 0.0
    %1310 = vmatprep.subr.mxu0 0.0
    %1311 = vmatpush1.msra.mxu0 0.0
    %1312 = vmatprep.subr.mxu0 0.0
    %1313 = vmatpush1.msra.mxu0 0.0
    %1314 = vmatprep.subr.mxu0 0.0
    %1315 = vmatpush1.msra.mxu0 0.0
    %1316 = vmatprep.subr.mxu0 0.0
    %1317 = vmatpush1.msra.mxu0 0.0
    %1318 = vmatprep.subr.mxu0 0.0
    %1319 = vmatpush1.msra.mxu0 0.0
    %1320 = vmatprep.subr.mxu0 0.0
    %1321 = vmatpush1.msra.mxu0 0.0
    %1322 = vmatprep.subr.mxu0 0.0
    %1323 = vmatpush1.msra.mxu0 0.0
    %1324 = vmatprep.subr.mxu0 0.0
    %1325 = vmatpush1.msra.mxu0 0.0
    %1326 = vmatprep.subr.mxu0 0.0
    %1327 = vmatpush1.msra.mxu0 0.0
    %1328 = vmatprep.subr.mxu0 0.0
    %1329 = vmatpush1.msra.mxu0 0.0
    %1330 = vmatprep.subr.mxu0 0.0
    %1331 = vmatpush1.msra.mxu0 0.0
    %1332 = vmatprep.subr.mxu0 0.0
    %1333 = vmatpush1.msra.mxu0 0.0
    %1334 = vmatprep.subr.mxu0 0.0
    %1335 = vmatpush1.msra.mxu0 0.0
    %1336 = vmatprep.subr.mxu0 0.0
    %1337 = vmatpush1.msra.mxu0 0.0
    %1338 = vmatprep.subr.mxu0 0.0
    %1339 = vmatpush1.msra.mxu0 0.0
    %1340 = vmatprep.subr.mxu0 0.0
    %1341 = vmatpush1.msra.mxu0 0.0
    %1342 = vmatprep.subr.mxu0 0.0
    %1343 = vmatpush1.msra.mxu0 0.0
    %1344 = vmatprep.subr.mxu0 0.0
    %1345 = vmatpush1.msra.mxu0 0.0
    %1346 = vmatprep.subr.mxu0 0.0
    %1347 = vmatpush1.msra.mxu0 0.0
    %1348 = vmatprep.subr.mxu0 0.0
    %1349 = vmatpush1.msra.mxu0 0.0
    %1350 = vmatprep.subr.mxu0 0.0
    %1351 = vmatpush1.msra.mxu0 0.0
    %1352 = vmatprep.subr.mxu0 0.0
    %1353 = vmatpush1.msra.mxu0 0.0
    %1354 = vmatprep.mubr.f32.mxu0 0.0
    %1355 = vmatmul.mubr.f32.gmra.mrb[0].mxu0 %v1288
    %v1356 = vpop.f32.mrb[0].mxu0
    %v1357 = vadd.f32 %v1285, %v1356
    %v1358 = vpop.f32.mrb[0].mxu0
    %1359 = vdwg.mxu0
    %v1360 = vxor.u32 %v1357, 2147483648
    %v1361 = vmul.f32 %v1360, 1.442695
    %v1362 = vpow.pop %v1361
    %v1363 = vadd.f32 %v1362, 1.0
    %v1364 = vrcp.pop %v1363
    %v1365 = vmul.f32 1.0, %v1364
    %1366 = vrot.lane.b32.xlu0 %v1284, 32
    %v1367 = vpop.permute.xlu0 %1366
    %v1369 = vmul.f32 %v1365, %v1367
    %1371 = vrot.lane.b32.xlu0 %v1369, 96
    %v1372 = vpop.permute.xlu0 %1371
    %1373 = vrot.lane.b32.xlu0 %v1285, 64
    %v1374 = vpop.permute.xlu0 %1373
    %v1376 = vsel %vm199, %v1372, 0
    %1378 = vmatprep.subr.mxu0 0.0
    %1379 = vmatpush1.msra.mxu0 %v277
    %1380 = vmatprep.subr.mxu0 0.0
    %1381 = vmatpush1.msra.mxu0 %v278
    %1382 = vmatprep.subr.mxu0 0.0
    %1383 = vmatpush1.msra.mxu0 %v279
    %1384 = vmatprep.subr.mxu0 0.0
    %1385 = vmatpush1.msra.mxu0 %v280
    %1386 = vmatprep.subr.mxu0 0.0
    %1387 = vmatpush1.msra.mxu0 0.0
    %1388 = vmatprep.subr.mxu0 0.0
    %1389 = vmatpush1.msra.mxu0 0.0
    %1390 = vmatprep.subr.mxu0 0.0
    %1391 = vmatpush1.msra.mxu0 0.0
    %1392 = vmatprep.subr.mxu0 0.0
    %1393 = vmatpush1.msra.mxu0 0.0
    %1394 = vmatprep.subr.mxu0 0.0
    %1395 = vmatpush1.msra.mxu0 0.0
    %1396 = vmatprep.subr.mxu0 0.0
    %1397 = vmatpush1.msra.mxu0 0.0
    %1398 = vmatprep.subr.mxu0 0.0
    %1399 = vmatpush1.msra.mxu0 0.0
    %1400 = vmatprep.subr.mxu0 0.0
    %1401 = vmatpush1.msra.mxu0 0.0
    %1402 = vmatprep.subr.mxu0 0.0
    %1403 = vmatpush1.msra.mxu0 0.0
    %1404 = vmatprep.subr.mxu0 0.0
    %1405 = vmatpush1.msra.mxu0 0.0
    %1406 = vmatprep.subr.mxu0 0.0
    %1407 = vmatpush1.msra.mxu0 0.0
    %1408 = vmatprep.subr.mxu0 0.0
    %1409 = vmatpush1.msra.mxu0 0.0
    %1410 = vmatprep.subr.mxu0 0.0
    %1411 = vmatpush1.msra.mxu0 0.0
    %1412 = vmatprep.subr.mxu0 0.0
    %1413 = vmatpush1.msra.mxu0 0.0
    %1414 = vmatprep.subr.mxu0 0.0
    %1415 = vmatpush1.msra.mxu0 0.0
    %1416 = vmatprep.subr.mxu0 0.0
    %1417 = vmatpush1.msra.mxu0 0.0
    %1418 = vmatprep.subr.mxu0 0.0
    %1419 = vmatpush1.msra.mxu0 0.0
    %1420 = vmatprep.subr.mxu0 0.0
    %1421 = vmatpush1.msra.mxu0 0.0
    %1422 = vmatprep.subr.mxu0 0.0
    %1423 = vmatpush1.msra.mxu0 0.0
    %1424 = vmatprep.subr.mxu0 0.0
    %1425 = vmatpush1.msra.mxu0 0.0
    %1426 = vmatprep.subr.mxu0 0.0
    %1427 = vmatpush1.msra.mxu0 0.0
    %1428 = vmatprep.subr.mxu0 0.0
    %1429 = vmatpush1.msra.mxu0 0.0
    %1430 = vmatprep.subr.mxu0 0.0
    %1431 = vmatpush1.msra.mxu0 0.0
    %1432 = vmatprep.subr.mxu0 0.0
    %1433 = vmatpush1.msra.mxu0 0.0
    %1434 = vmatprep.subr.mxu0 0.0
    %1435 = vmatpush1.msra.mxu0 0.0
    %1436 = vmatprep.subr.mxu0 0.0
    %1437 = vmatpush1.msra.mxu0 0.0
    %1438 = vmatprep.subr.mxu0 0.0
    %1439 = vmatpush1.msra.mxu0 0.0
    %1440 = vmatprep.subr.mxu0 0.0
    %1441 = vmatpush1.msra.mxu0 0.0
    %1442 = vmatprep.mubr.f32.mxu0 0.0
    %1443 = vmatmul.mubr.f32.gmra.mrb[0].mxu0 %v1376
    %v1444 = vpop.f32.mrb[0].mxu0
    %v1445 = vadd.f32 %v1374, %v1444
    %v1446 = vpop.f32.mrb[0].mxu0
    %1447 = vdwg.mxu0
    %v1448 = vtanh.pop %v1445
    %v1449 = vsub.f32 1.0, %v1365
    %v1450 = vmul.f32 %v1449, %v1284
    %v1451 = vmul.f32 %v1365, %v1448
    %v1452 = vadd.f32 %v1450, %v1451
    %v1453 = vrot.slane %v270, 7
    %v1456 = vsel %vm199, %v1452, 0
    %1458 = vmatprep.subr.mxu0 0.0
    %1459 = vmatpush1.msra.mxu0 %v273
    %1460 = vmatprep.subr.mxu0 0.0
    %1461 = vmatpush1.msra.mxu0 %v274
    %1462 = vmatprep.subr.mxu0 0.0
    %1463 = vmatpush1.msra.mxu0 %v275
    %1464 = vmatprep.subr.mxu0 0.0
    %1465 = vmatpush1.msra.mxu0 %v276
    %1466 = vmatprep.subr.mxu0 0.0
    %1467 = vmatpush1.msra.mxu0 0.0
    %1468 = vmatprep.subr.mxu0 0.0
    %1469 = vmatpush1.msra.mxu0 0.0
    %1470 = vmatprep.subr.mxu0 0.0
    %1471 = vmatpush1.msra.mxu0 0.0
    %1472 = vmatprep.subr.mxu0 0.0
    %1473 = vmatpush1.msra.mxu0 0.0
    %1474 = vmatprep.subr.mxu0 0.0
    %1475 = vmatpush1.msra.mxu0 0.0
    %1476 = vmatprep.subr.mxu0 0.0
    %1477 = vmatpush1.msra.mxu0 0.0
    %1478 = vmatprep.subr.mxu0 0.0
    %1479 = vmatpush1.msra.mxu0 0.0
    %1480 = vmatprep.subr.mxu0 0.0
    %1481 = vmatpush1.msra.mxu0 0.0
    %1482 = vmatprep.subr.mxu0 0.0
    %1483 = vmatpush1.msra.mxu0 0.0
    %1484 = vmatprep.subr.mxu0 0.0
    %1485 = vmatpush1.msra.mxu0 0.0
    %1486 = vmatprep.subr.mxu0 0.0
    %1487 = vmatpush1.msra.mxu0 0.0
    %1488 = vmatprep.subr.mxu0 0.0
    %1489 = vmatpush1.msra.mxu0 0.0
    %1490 = vmatprep.subr.mxu0 0.0
    %1491 = vmatpush1.msra.mxu0 0.0
    %1492 = vmatprep.subr.mxu0 0.0
    %1493 = vmatpush1.msra.mxu0 0.0
    %1494 = vmatprep.subr.mxu0 0.0
    %1495 = vmatpush1.msra.mxu0 0.0
    %1496 = vmatprep.subr.mxu0 0.0
    %1497 = vmatpush1.msra.mxu0 0.0
    %1498 = vmatprep.subr.mxu0 0.0
    %1499 = vmatpush1.msra.mxu0 0.0
    %1500 = vmatprep.subr.mxu0 0.0
    %1501 = vmatpush1.msra.mxu0 0.0
    %1502 = vmatprep.subr.mxu0 0.0
    %1503 = vmatpush1.msra.mxu0 0.0
    %1504 = vmatprep.subr.mxu0 0.0
    %1505 = vmatpush1.msra.mxu0 0.0
    %1506 = vmatprep.subr.mxu0 0.0
    %1507 = vmatpush1.msra.mxu0 0.0
    %1508 = vmatprep.subr.mxu0 0.0
    %1509 = vmatpush1.msra.mxu0 0.0
    %1510 = vmatprep.subr.mxu0 0.0
    %1511 = vmatpush1.msra.mxu0 0.0
    %1512 = vmatprep.subr.mxu0 0.0
    %1513 = vmatpush1.msra.mxu0 0.0
    %1514 = vmatprep.subr.mxu0 0.0
    %1515 = vmatpush1.msra.mxu0 0.0
    %1516 = vmatprep.subr.mxu0 0.0
    %1517 = vmatpush1.msra.mxu0 0.0
    %1518 = vmatprep.subr.mxu0 0.0
    %1519 = vmatpush1.msra.mxu0 0.0
    %1520 = vmatprep.subr.mxu0 0.0
    %1521 = vmatpush1.msra.mxu0 0.0
    %1522 = vmatprep.mubr.f32.mxu0 0.0
    %1523 = vmatmul.mubr.f32.gmra.mrb[0].mxu0 %v1456
    %v1524 = vpop.f32.mrb[0].mxu0
    %v1525 = vadd.f32 %v1453, %v1524
    %v1526 = vpop.f32.mrb[0].mxu0
    %1527 = vdwg.mxu0
    %v1528 = vxor.u32 %v1525, 2147483648
    %v1529 = vmul.f32 %v1528, 1.442695
    %v1530 = vpow.pop %v1529
    %v1531 = vadd.f32 %v1530, 1.0
    %v1532 = vrcp.pop %v1531
    %v1533 = vmul.f32 1.0, %v1532
    %1534 = vrot.lane.b32.xlu0 %v1452, 32
    %v1535 = vpop.permute.xlu0 %1534
    %v1537 = vmul.f32 %v1533, %v1535
    %1539 = vrot.lane.b32.xlu0 %v1537, 96
    %v1540 = vpop.permute.xlu0 %1539
    %1541 = vrot.lane.b32.xlu0 %v1453, 64
    %v1542 = vpop.permute.xlu0 %1541
    %v1544 = vsel %vm199, %v1540, 0
    %1546 = vmatprep.subr.mxu0 0.0
    %1547 = vmatpush1.msra.mxu0 %v277
    %1548 = vmatprep.subr.mxu0 0.0
    %1549 = vmatpush1.msra.mxu0 %v278
    %1550 = vmatprep.subr.mxu0 0.0
    %1551 = vmatpush1.msra.mxu0 %v279
    %1552 = vmatprep.subr.mxu0 0.0
    %1553 = vmatpush1.msra.mxu0 %v280
    %1554 = vmatprep.subr.mxu0 0.0
    %1555 = vmatpush1.msra.mxu0 0.0
    %1556 = vmatprep.subr.mxu0 0.0
    %1557 = vmatpush1.msra.mxu0 0.0
    %1558 = vmatprep.subr.mxu0 0.0
    %1559 = vmatpush1.msra.mxu0 0.0
    %1560 = vmatprep.subr.mxu0 0.0
    %1561 = vmatpush1.msra.mxu0 0.0
    %1562 = vmatprep.subr.mxu0 0.0
    %1563 = vmatpush1.msra.mxu0 0.0
    %1564 = vmatprep.subr.mxu0 0.0
    %1565 = vmatpush1.msra.mxu0 0.0
    %1566 = vmatprep.subr.mxu0 0.0
    %1567 = vmatpush1.msra.mxu0 0.0
    %1568 = vmatprep.subr.mxu0 0.0
    %1569 = vmatpush1.msra.mxu0 0.0
    %1570 = vmatprep.subr.mxu0 0.0
    %1571 = vmatpush1.msra.mxu0 0.0
    %1572 = vmatprep.subr.mxu0 0.0
    %1573 = vmatpush1.msra.mxu0 0.0
    %1574 = vmatprep.subr.mxu0 0.0
    %1575 = vmatpush1.msra.mxu0 0.0
    %1576 = vmatprep.subr.mxu0 0.0
    %1577 = vmatpush1.msra.mxu0 0.0
    %1578 = vmatprep.subr.mxu0 0.0
    %1579 = vmatpush1.msra.mxu0 0.0
    %1580 = vmatprep.subr.mxu0 0.0
    %1581 = vmatpush1.msra.mxu0 0.0
    %1582 = vmatprep.subr.mxu0 0.0
    %1583 = vmatpush1.msra.mxu0 0.0
    %1584 = vmatprep.subr.mxu0 0.0
    %1585 = vmatpush1.msra.mxu0 0.0
    %1586 = vmatprep.subr.mxu0 0.0
    %1587 = vmatpush1.msra.mxu0 0.0
    %1588 = vmatprep.subr.mxu0 0.0
    %1589 = vmatpush1.msra.mxu0 0.0
    %1590 = vmatprep.subr.mxu0 0.0
    %1591 = vmatpush1.msra.mxu0 0.0
    %1592 = vmatprep.subr.mxu0 0.0
    %1593 = vmatpush1.msra.mxu0 0.0
    %1594 = vmatprep.subr.mxu0 0.0
    %1595 = vmatpush1.msra.mxu0 0.0
    %1596 = vmatprep.subr.mxu0 0.0
    %1597 = vmatpush1.msra.mxu0 0.0
    %1598 = vmatprep.subr.mxu0 0.0
    %1599 = vmatpush1.msra.mxu0 0.0
    %1600 = vmatprep.subr.mxu0 0.0
    %1601 = vmatpush1.msra.mxu0 0.0
    %1602 = vmatprep.subr.mxu0 0.0
    %1603 = vmatpush1.msra.mxu0 0.0
    %1604 = vmatprep.subr.mxu0 0.0
    %1605 = vmatpush1.msra.mxu0 0.0
    %1606 = vmatprep.subr.mxu0 0.0
    %1607 = vmatpush1.msra.mxu0 0.0
    %1608 = vmatprep.subr.mxu0 0.0
    %1609 = vmatpush1.msra.mxu0 0.0
    %1610 = vmatprep.mubr.f32.mxu0 0.0
    %1611 = vmatmul.mubr.f32.gmra.mrb[0].mxu0 %v1544
    %v1612 = vpop.f32.mrb[0].mxu0
    %v1613 = vadd.f32 %v1542, %v1612
    %v1614 = vpop.f32.mrb[0].mxu0
    %1615 = vdwg.mxu0
    %v1616 = vtanh.pop %v1613
    %v1617 = vsub.f32 1.0, %v1533
    %v1618 = vmul.f32 %v1617, %v1452
    %v1619 = vmul.f32 %v1533, %v1616
    %v1620 = vadd.f32 %v1618, %v1619
    %v1621 = vld [vmem:[#allocation10] sm:$0xff]
    %v1622 = vld [vmem:[#allocation10 + $0x8] sm:$0xff]
    %v1623 = vld [vmem:[#allocation10 + $0x10] sm:$0xff]
    %v1624 = vld [vmem:[#allocation10 + $0x18] sm:$0xff]
    %v1625 = vld [vmem:[%s7] sm:$0x1]
    %v1627 = vsel %vm199, %v1620, 0
    %1629 = vmatprep.subr.mxu0 0.0
    %1630 = vmatpush1.msra.mxu0 %v1621
    %1631 = vmatprep.subr.mxu0 0.0
    %1632 = vmatpush1.msra.mxu0 %v1622
    %1633 = vmatprep.subr.mxu0 0.0
    %1634 = vmatpush1.msra.mxu0 %v1623
    %1635 = vmatprep.subr.mxu0 0.0
    %1636 = vmatpush1.msra.mxu0 %v1624
    %1637 = vmatprep.subr.mxu0 0.0
    %1638 = vmatpush1.msra.mxu0 0.0
    %1639 = vmatprep.subr.mxu0 0.0
    %1640 = vmatpush1.msra.mxu0 0.0
    %1641 = vmatprep.subr.mxu0 0.0
    %1642 = vmatpush1.msra.mxu0 0.0
    %1643 = vmatprep.subr.mxu0 0.0
    %1644 = vmatpush1.msra.mxu0 0.0
    %1645 = vmatprep.subr.mxu0 0.0
    %1646 = vmatpush1.msra.mxu0 0.0
    %1647 = vmatprep.subr.mxu0 0.0
    %1648 = vmatpush1.msra.mxu0 0.0
    %1649 = vmatprep.subr.mxu0 0.0
    %1650 = vmatpush1.msra.mxu0 0.0
    %1651 = vmatprep.subr.mxu0 0.0
    %1652 = vmatpush1.msra.mxu0 0.0
    %1653 = vmatprep.subr.mxu0 0.0
    %1654 = vmatpush1.msra.mxu0 0.0
    %1655 = vmatprep.subr.mxu0 0.0
    %1656 = vmatpush1.msra.mxu0 0.0
    %1657 = vmatprep.subr.mxu0 0.0
    %1658 = vmatpush1.msra.mxu0 0.0
    %1659 = vmatprep.subr.mxu0 0.0
    %1660 = vmatpush1.msra.mxu0 0.0
    %1661 = vmatprep.subr.mxu0 0.0
    %1662 = vmatpush1.msra.mxu0 0.0
    %1663 = vmatprep.subr.mxu0 0.0
    %1664 = vmatpush1.msra.mxu0 0.0
    %1665 = vmatprep.subr.mxu0 0.0
    %1666 = vmatpush1.msra.mxu0 0.0
    %1667 = vmatprep.subr.mxu0 0.0
    %1668 = vmatpush1.msra.mxu0 0.0
    %1669 = vmatprep.subr.mxu0 0.0
    %1670 = vmatpush1.msra.mxu0 0.0
    %1671 = vmatprep.subr.mxu0 0.0
    %1672 = vmatpush1.msra.mxu0 0.0
    %1673 = vmatprep.subr.mxu0 0.0
    %1674 = vmatpush1.msra.mxu0 0.0
    %1675 = vmatprep.subr.mxu0 0.0
    %1676 = vmatpush1.msra.mxu0 0.0
    %1677 = vmatprep.subr.mxu0 0.0
    %1678 = vmatpush1.msra.mxu0 0.0
    %1679 = vmatprep.subr.mxu0 0.0
    %1680 = vmatpush1.msra.mxu0 0.0
    %1681 = vmatprep.subr.mxu0 0.0
    %1682 = vmatpush1.msra.mxu0 0.0
    %1683 = vmatprep.subr.mxu0 0.0
    %1684 = vmatpush1.msra.mxu0 0.0
    %1685 = vmatprep.subr.mxu0 0.0
    %1686 = vmatpush1.msra.mxu0 0.0
    %1687 = vmatprep.subr.mxu0 0.0
    %1688 = vmatpush1.msra.mxu0 0.0
    %1689 = vmatprep.subr.mxu0 0.0
    %1690 = vmatpush1.msra.mxu0 0.0
    %1691 = vmatprep.subr.mxu0 0.0
    %1692 = vmatpush1.msra.mxu0 0.0
    %1693 = vmatprep.mubr.f32.mxu0 0.0
    %1694 = vmatmul.mubr.f32.gmra.mrb[0].mxu0 %v1627
    %v1695 = vpop.f32.mrb[0].mxu0
    %v1696 = vadd.f32 %v1625, %v1695
    %v1697 = vpop.f32.mrb[0].mxu0
    %1698 = vdwg.mxu0
    %vm1699 = vcmask 1040384
    %v1700 = vsel %vm1699, %v1696, -inf
    %1701 = vmax.index.xlane.f32.xlu0 %v1700
    %v1702 = vpop.xlane.xlu0 %1701
    %s1703 = vtos %v1702
    %s1704 = scalar_lea.smem [#allocation11], 0
    %1705 = sst [smem:[%s1704]] %s1703
    // Predicated region
    $region54: #{tpu_custom_call.1} parent=1 // pred_check
      _
    $region55: #{tpu_custom_call.1} parent=1 // pred_check_branch
      %1707 = sbr.rel (0) target = $region57
    $region56: #{tpu_custom_call.1} parent=1 // pred_region
      %s1709 = ssub.s32 16, 16
      %1710 = vsyncadd [#allocation4], %s1709
      %1713 = dma.smem_to_hbm [#allocation11], 16, %s8, [#allocation4]
    $region57: #{tpu_custom_call.1} parent=1 // pred_fallthru
      _
    // Predicated region
    $region58: #{tpu_custom_call.1} parent=1 // pred_check
      _
    $region59: #{tpu_custom_call.1} parent=1 // pred_check_branch
      %1715 = sbr.rel (0) target = $region61
    $region60: #{tpu_custom_call.1} parent=1 // pred_region
      %1716 = dma.done [#allocation4], 16
    $region61: #{tpu_custom_call.1} parent=1 // pred_fallthru
      _
    %1717 = sfence
    %1718 = vsyncpa [#allocation3], 1
    %1719 = vsyncpa [#allocation6], 1
    %1720 = vsyncpa [#allocation9], 1
    %1721 = vsyncpa [#allocation4], 1

</llo_original>
